<compile_context>
chip_gen: v6e
topology: v6e:2x2x1
jax: 0.10.0
libtpu: 0.0.40
codegen_flags: <defaults>
</compile_context>

<pallas_src>
import jax
import jax.numpy as jnp
from jax.experimental import pallas as pl
from jax.experimental.pallas import tpu as pltpu


def _leaky_relu(x, slope=0.2):
    return jnp.where(x > 0, x, slope * x)


def ae_encoder_kernel(x_ref,
                      w1_ref, b1_ref,
                      w2_ref, b2_ref,
                      w3_ref, b3_ref,
                      wz_ref, bz_ref,
                      out_ref):
    # Layer 1 in full f32 (negligible cost, keeps close to the torch reference).
    x = x_ref[...]
    z = jnp.dot(x, w1_ref[...], preferred_element_type=jnp.float32) + b1_ref[...]
    z = _leaky_relu(z)

    # Layers 2-4: bf16 MXU feeds, f32 accumulation, f32 bias-add + LeakyReLU.
    z = jnp.dot(z.astype(jnp.bfloat16), w2_ref[...],
                preferred_element_type=jnp.float32) + b2_ref[...]
    z = _leaky_relu(z)

    z = jnp.dot(z.astype(jnp.bfloat16), w3_ref[...],
                preferred_element_type=jnp.float32) + b3_ref[...]
    z = _leaky_relu(z)

    z_ae = jnp.dot(z.astype(jnp.bfloat16), wz_ref[...],
                   preferred_element_type=jnp.float32) + bz_ref[...]
    out_ref[...] = z_ae.astype(out_ref.dtype)


def _round_up(x, m):
    return ((x + m - 1) // m) * m


def _num_tensorcores():
    """2 TensorCores per chip on v7x, 1 on v5e/v6e (heuristic on device_kind)."""
    try:
        kind = jax.devices()[0].device_kind.lower()
    except Exception:  # no device info available
        return 1
    return 2 if ("v7" in kind or "7x" in kind) else 1


def _choose_grid(n_rows, *, max_tm=2048, row_align=256, num_cores=1):
    """Pick (tm, grid_n).  tm is a multiple of row_align (bf16 sublane packing /
    full MXU M-cadence); on multi-TC chips grid_n is rounded up to a multiple of
    the core count so the 'parallel' axis splits evenly."""
    grid_n = max(1, pl.cdiv(n_rows, max_tm))
    if num_cores > 1:
        grid_n = _round_up(grid_n, num_cores)
    tm = min(max_tm, _round_up(pl.cdiv(n_rows, grid_n), row_align))
    return tm, grid_n


def prepare_params(params):
    """One-time conversion of (in, out)-layout f32 params into kernel dtypes:
    w1 stays f32 (layer-1 precision), w2/w3/wz go to bf16, biases stay f32 and
    are reshaped to (1, h) so they broadcast over the row tile in-kernel."""
    return dict(
        w1=params["w1"].astype(jnp.float32),
        b1=params["b1"].reshape(1, -1).astype(jnp.float32),
        w2=params["w2"].astype(jnp.bfloat16),
        b2=params["b2"].reshape(1, -1).astype(jnp.float32),
        w3=params["w3"].astype(jnp.bfloat16),
        b3=params["b3"].reshape(1, -1).astype(jnp.float32),
        wz=params["wz"].astype(jnp.bfloat16),
        bz=params["bz"].reshape(1, -1).astype(jnp.float32),
    )


def ae_encoder_forward(x, prepared, *, max_tm=2048):
    """x: (N, n_input) float32.  prepared: output of prepare_params()."""
    N, n_input = x.shape
    w1, b1 = prepared["w1"], prepared["b1"]
    w2, b2 = prepared["w2"], prepared["b2"]
    w3, b3 = prepared["w3"], prepared["b3"]
    wz, bz = prepared["wz"], prepared["bz"]
    h1, h2, h3, n_z = w1.shape[1], w2.shape[1], w3.shape[1], wz.shape[1]

    tm, grid_n = _choose_grid(N, max_tm=max_tm, num_cores=_num_tensorcores())

    def full(arr):
        # Full-array block with a constant block index: Pallas keeps it resident
        # in VMEM and does not re-DMA it per grid step.
        nd = arr.ndim
        return pl.BlockSpec(arr.shape, lambda i, _nd=nd: (0,) * _nd)

    weight_bytes = sum(int(a.size) * a.dtype.itemsize for a in prepared.values())
    cost = pl.CostEstimate(
        flops=2 * N * (n_input * h1 + h1 * h2 + h2 * h3 + h3 * n_z),
        transcendentals=0,
        bytes_accessed=N * n_input * x.dtype.itemsize + N * n_z * 4 + weight_bytes,
    )

    out = pl.pallas_call(
        ae_encoder_kernel,
        out_shape=jax.ShapeDtypeStruct((N, n_z), jnp.float32),
        grid_spec=pltpu.PrefetchScalarGridSpec(
            num_scalar_prefetch=0,
            grid=(grid_n,),
            in_specs=[
                pl.BlockSpec((tm, n_input), lambda i: (i, 0)),   # x row tile (f32)
                full(w1), full(b1),
                full(w2), full(b2),
                full(w3), full(b3),
                full(wz), full(bz),
            ],
            # Ragged last tile is handled by Pallas partial-block writeback;
            # no wrapper-side pad or out[:N] slice needed.
            out_specs=pl.BlockSpec((tm, n_z), lambda i: (i, 0)),
        ),
        compiler_params=pltpu.CompilerParams(
            dimension_semantics=("parallel",)),
        cost_estimate=cost,
    )(x, w1, b1, w2, b2, w3, b3, wz, bz)

    return out


def init_params(key, n_input, h1, h2, h3, n_z):
    """Deterministic init mimicking torch.nn.Linear default:
    U(-1/sqrt(fan_in), 1/sqrt(fan_in)) for both weight and bias.
    Weights stored transposed: (in, out)."""
    dims = [(n_input, h1), (h1, h2), (h2, h3), (h3, n_z)]
    names = ["1", "2", "3", "z"]
    params = {}
    for (din, dout), nm in zip(dims, names):
        key, kw, kb = jax.random.split(key, 3)
        bound = 1.0 / jnp.sqrt(jnp.float32(din))
        params[f"w{nm}"] = jax.random.uniform(
            kw, (din, dout), jnp.float32, -bound, bound)
        params[f"b{nm}"] = jax.random.uniform(
            kb, (dout,), jnp.float32, -bound, bound)
    return params


def ae_encoder_reference(x, params):
    """Pure-JAX f32 reference matching the PyTorch forward."""
    z = _leaky_relu(x @ params["w1"] + params["b1"])
    z = _leaky_relu(z @ params["w2"] + params["b2"])
    z = _leaky_relu(z @ params["w3"] + params["b3"])
    return z @ params["wz"] + params["bz"]


if __name__ == "__main__":
    # Small shapes consistent with the module: (batch, n_input) -> (batch, n_z).
    # N deliberately NOT a multiple of the row tile to exercise the ragged path.
    N = 300
    n_input, h1, h2, h3, n_z = 64, 128, 64, 32, 16

    key = jax.random.PRNGKey(0)
    key, kx = jax.random.split(key)
    x = jax.random.normal(kx, (N, n_input), dtype=jnp.float32)
    raw_params = init_params(key, n_input, h1, h2, h3, n_z)
    prepared = prepare_params(raw_params)   # one-time dtype/layout conversion

    out = ae_encoder_forward(x, prepared)
    out = jax.block_until_ready(out)

    ref = ae_encoder_reference(x, raw_params)
    assert out.shape == (N, n_z)
    # Layers 2-4 use bf16 MXU feeds with f32 accumulation: loosened tolerance.
    assert jnp.allclose(out, ref, atol=5e-2, rtol=5e-2), "mismatch vs reference"

    print("KERNEL_OK")
</pallas_src>

<mosaic_0001>
module attributes {stable_mosaic.version = 11 : i64} {
  func.func @ae_encoder_kernel(%arg0: i32, %arg1: memref<512x64xf32, #tpu.memory_space<vmem>>, %arg2: memref<64x128xf32, #tpu.memory_space<vmem>>, %arg3: memref<1x128xf32, #tpu.memory_space<vmem>>, %arg4: memref<128x64xbf16, #tpu.memory_space<vmem>>, %arg5: memref<1x64xf32, #tpu.memory_space<vmem>>, %arg6: memref<64x32xbf16, #tpu.memory_space<vmem>>, %arg7: memref<1x32xf32, #tpu.memory_space<vmem>>, %arg8: memref<32x16xbf16, #tpu.memory_space<vmem>>, %arg9: memref<1x16xf32, #tpu.memory_space<vmem>>, %arg10: memref<512x16xf32, #tpu.memory_space<vmem>>) attributes {dimension_semantics = [#tpu.dimension_semantics<parallel>], iteration_bounds = array<i64: 1>, scalar_prefetch = 0 : i64, scratch_operands = 0 : i64, tpu.core_type = #tpu.core_type<tc>, window_params = [{transform_indices = @transform_0, window_bounds = array<i64: 512, 64>}, {pipeline_mode = #tpu.pipeline_mode<synchronous>, transform_indices = @transform_1, window_bounds = array<i64: 64, 128>}, {pipeline_mode = #tpu.pipeline_mode<synchronous>, transform_indices = @transform_2, window_bounds = array<i64: 1, 128>}, {pipeline_mode = #tpu.pipeline_mode<synchronous>, transform_indices = @transform_3, window_bounds = array<i64: 128, 64>}, {pipeline_mode = #tpu.pipeline_mode<synchronous>, transform_indices = @transform_4, window_bounds = array<i64: 1, 64>}, {pipeline_mode = #tpu.pipeline_mode<synchronous>, transform_indices = @transform_5, window_bounds = array<i64: 64, 32>}, {pipeline_mode = #tpu.pipeline_mode<synchronous>, transform_indices = @transform_6, window_bounds = array<i64: 1, 32>}, {pipeline_mode = #tpu.pipeline_mode<synchronous>, transform_indices = @transform_7, window_bounds = array<i64: 32, 16>}, {pipeline_mode = #tpu.pipeline_mode<synchronous>, transform_indices = @transform_8, window_bounds = array<i64: 1, 16>}, {transform_indices = @transform_9, window_bounds = array<i64: 512, 16>}]} {
    %c0 = arith.constant 0 : index
    %c0_0 = arith.constant 0 : index
    %0 = vector.load %arg1[%c0, %c0_0] : memref<512x64xf32, #tpu.memory_space<vmem>>, vector<512x64xf32>
    %c0_1 = arith.constant 0 : index
    %c0_2 = arith.constant 0 : index
    %1 = vector.load %arg2[%c0_1, %c0_2] : memref<64x128xf32, #tpu.memory_space<vmem>>, vector<64x128xf32>
    %cst = arith.constant dense<0.000000e+00> : vector<512x128xf32>
    %2 = tpu.matmul %0, %1, %cst {dimension_numbers = #tpu.dot_dimension_numbers<[1], [0], [0], [1], [0, 0, 1, 1], [], []>} : vector<512x64xf32>, vector<64x128xf32>, vector<512x128xf32> -> vector<512x128xf32>
    %c0_3 = arith.constant 0 : index
    %c0_4 = arith.constant 0 : index
    %3 = vector.load %arg3[%c0_3, %c0_4] : memref<1x128xf32, #tpu.memory_space<vmem>>, vector<1x128xf32>
    %4 = vector.broadcast %3 : vector<1x128xf32> to vector<512x128xf32>
    %5 = arith.addf %2, %4 : vector<512x128xf32>
    %cst_5 = arith.constant 0.000000e+00 : f32
    %6 = vector.broadcast %cst_5 : f32 to vector<512x128xf32>
    %7 = arith.cmpf ogt, %5, %6 : vector<512x128xf32>
    %cst_6 = arith.constant 2.000000e-01 : f32
    %8 = vector.broadcast %cst_6 : f32 to vector<512x128xf32>
    %9 = arith.mulf %8, %5 : vector<512x128xf32>
    %10 = arith.select %7, %5, %9 : vector<512x128xi1>, vector<512x128xf32>
    %11 = arith.truncf %10 : vector<512x128xf32> to vector<512x128xbf16>
    %c0_7 = arith.constant 0 : index
    %c0_8 = arith.constant 0 : index
    %12 = vector.load %arg4[%c0_7, %c0_8] : memref<128x64xbf16, #tpu.memory_space<vmem>>, vector<128x64xbf16>
    %cst_9 = arith.constant dense<0.000000e+00> : vector<512x64xf32>
    %13 = tpu.matmul %11, %12, %cst_9 {dimension_numbers = #tpu.dot_dimension_numbers<[1], [0], [0], [1], [0, 0, 1, 1], [], []>} : vector<512x128xbf16>, vector<128x64xbf16>, vector<512x64xf32> -> vector<512x64xf32>
    %c0_10 = arith.constant 0 : index
    %c0_11 = arith.constant 0 : index
    %14 = vector.load %arg5[%c0_10, %c0_11] : memref<1x64xf32, #tpu.memory_space<vmem>>, vector<1x64xf32>
    %15 = vector.broadcast %14 : vector<1x64xf32> to vector<512x64xf32>
    %16 = arith.addf %13, %15 : vector<512x64xf32>
    %cst_12 = arith.constant 0.000000e+00 : f32
    %17 = vector.broadcast %cst_12 : f32 to vector<512x64xf32>
    %18 = arith.cmpf ogt, %16, %17 : vector<512x64xf32>
    %cst_13 = arith.constant 2.000000e-01 : f32
    %19 = vector.broadcast %cst_13 : f32 to vector<512x64xf32>
    %20 = arith.mulf %19, %16 : vector<512x64xf32>
    %21 = arith.select %18, %16, %20 : vector<512x64xi1>, vector<512x64xf32>
    %22 = arith.truncf %21 : vector<512x64xf32> to vector<512x64xbf16>
    %c0_14 = arith.constant 0 : index
    %c0_15 = arith.constant 0 : index
    %23 = vector.load %arg6[%c0_14, %c0_15] : memref<64x32xbf16, #tpu.memory_space<vmem>>, vector<64x32xbf16>
    %cst_16 = arith.constant dense<0.000000e+00> : vector<512x32xf32>
    %24 = tpu.matmul %22, %23, %cst_16 {dimension_numbers = #tpu.dot_dimension_numbers<[1], [0], [0], [1], [0, 0, 1, 1], [], []>} : vector<512x64xbf16>, vector<64x32xbf16>, vector<512x32xf32> -> vector<512x32xf32>
    %c0_17 = arith.constant 0 : index
    %c0_18 = arith.constant 0 : index
    %25 = vector.load %arg7[%c0_17, %c0_18] : memref<1x32xf32, #tpu.memory_space<vmem>>, vector<1x32xf32>
    %26 = vector.broadcast %25 : vector<1x32xf32> to vector<512x32xf32>
    %27 = arith.addf %24, %26 : vector<512x32xf32>
    %cst_19 = arith.constant 0.000000e+00 : f32
    %28 = vector.broadcast %cst_19 : f32 to vector<512x32xf32>
    %29 = arith.cmpf ogt, %27, %28 : vector<512x32xf32>
    %cst_20 = arith.constant 2.000000e-01 : f32
    %30 = vector.broadcast %cst_20 : f32 to vector<512x32xf32>
    %31 = arith.mulf %30, %27 : vector<512x32xf32>
    %32 = arith.select %29, %27, %31 : vector<512x32xi1>, vector<512x32xf32>
    %33 = arith.truncf %32 : vector<512x32xf32> to vector<512x32xbf16>
    %c0_21 = arith.constant 0 : index
    %c0_22 = arith.constant 0 : index
    %34 = vector.load %arg8[%c0_21, %c0_22] : memref<32x16xbf16, #tpu.memory_space<vmem>>, vector<32x16xbf16>
    %cst_23 = arith.constant dense<0.000000e+00> : vector<512x16xf32>
    %35 = tpu.matmul %33, %34, %cst_23 {dimension_numbers = #tpu.dot_dimension_numbers<[1], [0], [0], [1], [0, 0, 1, 1], [], []>} : vector<512x32xbf16>, vector<32x16xbf16>, vector<512x16xf32> -> vector<512x16xf32>
    %c0_24 = arith.constant 0 : index
    %c0_25 = arith.constant 0 : index
    %36 = vector.load %arg9[%c0_24, %c0_25] : memref<1x16xf32, #tpu.memory_space<vmem>>, vector<1x16xf32>
    %37 = vector.broadcast %36 : vector<1x16xf32> to vector<512x16xf32>
    %38 = arith.addf %35, %37 : vector<512x16xf32>
    %c0_26 = arith.constant 0 : index
    %c0_27 = arith.constant 0 : index
    %39 = vector.load %arg10[%c0_26, %c0_27] : memref<512x16xf32, #tpu.memory_space<vmem>>, vector<512x16xf32>
    tpu.vector_store %arg10[%c0_26, %c0_27], %38 {strides = array<i32>} : memref<512x16xf32, #tpu.memory_space<vmem>>, vector<512x16xf32>,
    return
  }
  func.func @transform_0(%arg0: i32) -> (i32, i32) {
    %c0_i32 = arith.constant 0 : i32
    %c0_i32_0 = arith.constant 0 : i32
    return %arg0, %c0_i32 : i32, i32
  }
  func.func @transform_1(%arg0: i32) -> (i32, i32) {
    %c0_i32 = arith.constant 0 : i32
    %c0_i32_0 = arith.constant 0 : i32
    %c0_i32_1 = arith.constant 0 : i32
    return %c0_i32, %c0_i32_0 : i32, i32
  }
  func.func @transform_2(%arg0: i32) -> (i32, i32) {
    %c0_i32 = arith.constant 0 : i32
    %c0_i32_0 = arith.constant 0 : i32
    %c0_i32_1 = arith.constant 0 : i32
    return %c0_i32, %c0_i32_0 : i32, i32
  }
  func.func @transform_3(%arg0: i32) -> (i32, i32) {
    %c0_i32 = arith.constant 0 : i32
    %c0_i32_0 = arith.constant 0 : i32
    %c0_i32_1 = arith.constant 0 : i32
    return %c0_i32, %c0_i32_0 : i32, i32
  }
  func.func @transform_4(%arg0: i32) -> (i32, i32) {
    %c0_i32 = arith.constant 0 : i32
    %c0_i32_0 = arith.constant 0 : i32
    %c0_i32_1 = arith.constant 0 : i32
    return %c0_i32, %c0_i32_0 : i32, i32
  }
  func.func @transform_5(%arg0: i32) -> (i32, i32) {
    %c0_i32 = arith.constant 0 : i32
    %c0_i32_0 = arith.constant 0 : i32
    %c0_i32_1 = arith.constant 0 : i32
    return %c0_i32, %c0_i32_0 : i32, i32
  }
  func.func @transform_6(%arg0: i32) -> (i32, i32) {
    %c0_i32 = arith.constant 0 : i32
    %c0_i32_0 = arith.constant 0 : i32
    %c0_i32_1 = arith.constant 0 : i32
    return %c0_i32, %c0_i32_0 : i32, i32
  }
  func.func @transform_7(%arg0: i32) -> (i32, i32) {
    %c0_i32 = arith.constant 0 : i32
    %c0_i32_0 = arith.constant 0 : i32
    %c0_i32_1 = arith.constant 0 : i32
    return %c0_i32, %c0_i32_0 : i32, i32
  }
  func.func @transform_8(%arg0: i32) -> (i32, i32) {
    %c0_i32 = arith.constant 0 : i32
    %c0_i32_0 = arith.constant 0 : i32
    %c0_i32_1 = arith.constant 0 : i32
    return %c0_i32, %c0_i32_0 : i32, i32
  }
  func.func @transform_9(%arg0: i32) -> (i32, i32) {
    %c0_i32 = arith.constant 0 : i32
    %c0_i32_0 = arith.constant 0 : i32
    return %arg0, %c0_i32 : i32, i32
  }
}

</mosaic_0001>

<llo_original>
// kernel: tpu_custom_call.1
$region0: #{tpu_custom_call.1}
  #allocation0 [shape = 'u32[]', space=smem, size = 0x4, offset = 0x4, fixed_abs, tag = 'smem constant byte address 0x4 - core index']
  #allocation1 [shape = 'u32[144,128]{1,0:T(1,128)}', space=vmem, size = 0x12000, scoped, tag = 'internal scratch']
  %s0 = inlined_call_operand.vmem [shape: f32[300,64], index: 0, kind: input, shape index: {}]
  %s1 = inlined_call_operand.vmem [shape: f32[64,128], index: 1, kind: input, shape index: {}]
  %s2 = inlined_call_operand.vmem [shape: f32[1,128], index: 2, kind: input, shape index: {}]
  %s3 = inlined_call_operand.vmem [shape: bf16[128,64], index: 3, kind: input, shape index: {}]
  %s4 = inlined_call_operand.vmem [shape: f32[1,64], index: 4, kind: input, shape index: {}]
  %s5 = inlined_call_operand.vmem [shape: bf16[64,32], index: 5, kind: input, shape index: {}]
  %s6 = inlined_call_operand.vmem [shape: f32[1,32], index: 6, kind: input, shape index: {}]
  %s7 = inlined_call_operand.vmem [shape: bf16[32,16], index: 7, kind: input, shape index: {}]
  %s8 = inlined_call_operand.vmem [shape: f32[1,16], index: 8, kind: input, shape index: {}]
  %s9 = inlined_call_operand.vmem [shape: f32[300,16], index: 9, kind: output, shape index: {}]
  %s10 = sld [smem:[#allocation0]]
  $region80: #{tpu_custom_call.1} parent=0
    _
  %s12 = ssub.s32 1, %s10
  %s13 = scalar_select 0, %s12, %s10
  $region1: #{tpu_custom_call.1} parent=0
    #allocation2 [shape = 'u8[262144]{0}', space=vmem, size = 0x40000, scoped, tag = 'output window, operand 0, single buffered']
    // Predicated region
    $region2: #{tpu_custom_call.1} parent=1 // pred_check
      _
    $region3: #{tpu_custom_call.1} parent=1 // pred_check_branch
      %15 = sbr.rel (0) target = $region5
    $region4: #{tpu_custom_call.1} parent=1 // pred_region
      _
    $region5: #{tpu_custom_call.1} parent=1 // pred_fallthru
      _
    // Predicated region
    $region6: #{tpu_custom_call.1} parent=1 // pred_check
      _
    $region7: #{tpu_custom_call.1} parent=1 // pred_check_branch
      %17 = sbr.rel (0) target = $region9
    $region8: #{tpu_custom_call.1} parent=1 // pred_region
      _
    $region9: #{tpu_custom_call.1} parent=1 // pred_fallthru
      _
    // Predicated region
    $region10: #{tpu_custom_call.1} parent=1 // pred_check
      _
    $region11: #{tpu_custom_call.1} parent=1 // pred_check_branch
      %19 = sbr.rel (0) target = $region13
    $region12: #{tpu_custom_call.1} parent=1 // pred_region
      _
    $region13: #{tpu_custom_call.1} parent=1 // pred_fallthru
      _
    // Predicated region
    $region14: #{tpu_custom_call.1} parent=1 // pred_check
      _
    $region15: #{tpu_custom_call.1} parent=1 // pred_check_branch
      %21 = sbr.rel (0) target = $region17
    $region16: #{tpu_custom_call.1} parent=1 // pred_region
      _
    $region17: #{tpu_custom_call.1} parent=1 // pred_fallthru
      _
    // Predicated region
    $region18: #{tpu_custom_call.1} parent=1 // pred_check
      _
    $region19: #{tpu_custom_call.1} parent=1 // pred_check_branch
      %23 = sbr.rel (0) target = $region21
    $region20: #{tpu_custom_call.1} parent=1 // pred_region
      _
    $region21: #{tpu_custom_call.1} parent=1 // pred_fallthru
      _
    // Predicated region
    $region22: #{tpu_custom_call.1} parent=1 // pred_check
      _
    $region23: #{tpu_custom_call.1} parent=1 // pred_check_branch
      %25 = sbr.rel (0) target = $region25
    $region24: #{tpu_custom_call.1} parent=1 // pred_region
      _
    $region25: #{tpu_custom_call.1} parent=1 // pred_fallthru
      _
    // Predicated region
    $region26: #{tpu_custom_call.1} parent=1 // pred_check
      _
    $region27: #{tpu_custom_call.1} parent=1 // pred_check_branch
      %27 = sbr.rel (0) target = $region29
    $region28: #{tpu_custom_call.1} parent=1 // pred_region
      _
    $region29: #{tpu_custom_call.1} parent=1 // pred_fallthru
      _
    // Predicated region
    $region30: #{tpu_custom_call.1} parent=1 // pred_check
      _
    $region31: #{tpu_custom_call.1} parent=1 // pred_check_branch
      %29 = sbr.rel (0) target = $region33
    $region32: #{tpu_custom_call.1} parent=1 // pred_region
      _
    $region33: #{tpu_custom_call.1} parent=1 // pred_fallthru
      _
    // Predicated region
    $region34: #{tpu_custom_call.1} parent=1 // pred_check
      _
    $region35: #{tpu_custom_call.1} parent=1 // pred_check_branch
      %31 = sbr.rel (0) target = $region37
    $region36: #{tpu_custom_call.1} parent=1 // pred_region
      _
    $region37: #{tpu_custom_call.1} parent=1 // pred_fallthru
      _
    %v33 = vld [vmem:[%s0] sm:$0xff]
    %v34 = vld [vmem:[%s0 + $0x8] sm:$0xff]
    %v35 = vld [vmem:[%s0 + $0x10] sm:$0xff]
    %v36 = vld [vmem:[%s0 + $0x18] sm:$0xff]
    %v37 = vld [vmem:[%s0 + $0x20] sm:$0xff]
    %v38 = vld [vmem:[%s0 + $0x28] sm:$0xff]
    %v39 = vld [vmem:[%s0 + $0x30] sm:$0xff]
    %v40 = vld [vmem:[%s0 + $0x38] sm:$0xff]
    %v41 = vld [vmem:[%s0 + $0x40] sm:$0xff]
    %v42 = vld [vmem:[%s0 + $0x48] sm:$0xff]
    %v43 = vld [vmem:[%s0 + $0x50] sm:$0xff]
    %v44 = vld [vmem:[%s0 + $0x58] sm:$0xff]
    %v45 = vld [vmem:[%s0 + $0x60] sm:$0xff]
    %v46 = vld [vmem:[%s0 + $0x68] sm:$0xff]
    %v47 = vld [vmem:[%s0 + $0x70] sm:$0xff]
    %v48 = vld [vmem:[%s0 + $0x78] sm:$0xff]
    %v49 = vld [vmem:[%s0 + $0x80] sm:$0xff]
    %v50 = vld [vmem:[%s0 + $0x88] sm:$0xff]
    %v51 = vld [vmem:[%s0 + $0x90] sm:$0xff]
    %v52 = vld [vmem:[%s0 + $0x98] sm:$0xff]
    %v53 = vld [vmem:[%s0 + $0xa0] sm:$0xff]
    %v54 = vld [vmem:[%s0 + $0xa8] sm:$0xff]
    %v55 = vld [vmem:[%s0 + $0xb0] sm:$0xff]
    %v56 = vld [vmem:[%s0 + $0xb8] sm:$0xff]
    %v57 = vld [vmem:[%s0 + $0xc0] sm:$0xff]
    %v58 = vld [vmem:[%s0 + $0xc8] sm:$0xff]
    %v59 = vld [vmem:[%s0 + $0xd0] sm:$0xff]
    %v60 = vld [vmem:[%s0 + $0xd8] sm:$0xff]
    %v61 = vld [vmem:[%s0 + $0xe0] sm:$0xff]
    %v62 = vld [vmem:[%s0 + $0xe8] sm:$0xff]
    %v63 = vld [vmem:[%s0 + $0xf0] sm:$0xff]
    %v64 = vld [vmem:[%s0 + $0xf8] sm:$0xff]
    %v65 = vld [vmem:[%s0 + $0x100] sm:$0xff]
    %v66 = vld [vmem:[%s0 + $0x108] sm:$0xff]
    %v67 = vld [vmem:[%s0 + $0x110] sm:$0xff]
    %v68 = vld [vmem:[%s0 + $0x118] sm:$0xff]
    %v69 = vld [vmem:[%s0 + $0x120] sm:$0xff]
    %v70 = vld [vmem:[%s0 + $0x128] sm:$0xff]
    %v71 = vld [vmem:[%s0 + $0x130] sm:$0xff]
    %v72 = vld [vmem:[%s0 + $0x138] sm:$0xff]
    %v73 = vld [vmem:[%s0 + $0x140] sm:$0xff]
    %v74 = vld [vmem:[%s0 + $0x148] sm:$0xff]
    %v75 = vld [vmem:[%s0 + $0x150] sm:$0xff]
    %v76 = vld [vmem:[%s0 + $0x158] sm:$0xff]
    %v77 = vld [vmem:[%s0 + $0x160] sm:$0xff]
    %v78 = vld [vmem:[%s0 + $0x168] sm:$0xff]
    %v79 = vld [vmem:[%s0 + $0x170] sm:$0xff]
    %v80 = vld [vmem:[%s0 + $0x178] sm:$0xff]
    %v81 = vld [vmem:[%s0 + $0x180] sm:$0xff]
    %v82 = vld [vmem:[%s0 + $0x188] sm:$0xff]
    %v83 = vld [vmem:[%s0 + $0x190] sm:$0xff]
    %v84 = vld [vmem:[%s0 + $0x198] sm:$0xff]
    %v85 = vld [vmem:[%s0 + $0x1a0] sm:$0xff]
    %v86 = vld [vmem:[%s0 + $0x1a8] sm:$0xff]
    %v87 = vld [vmem:[%s0 + $0x1b0] sm:$0xff]
    %v88 = vld [vmem:[%s0 + $0x1b8] sm:$0xff]
    %v89 = vld [vmem:[%s0 + $0x1c0] sm:$0xff]
    %v90 = vld [vmem:[%s0 + $0x1c8] sm:$0xff]
    %v91 = vld [vmem:[%s0 + $0x1d0] sm:$0xff]
    %v92 = vld [vmem:[%s0 + $0x1d8] sm:$0xff]
    %v93 = vld [vmem:[%s0 + $0x1e0] sm:$0xff]
    %v94 = vld [vmem:[%s0 + $0x1e8] sm:$0xff]
    %v95 = vld [vmem:[%s0 + $0x1f0] sm:$0xff]
    %v96 = vld [vmem:[%s0 + $0x1f8] sm:$0xff]
    %v97 = vld [vmem:[%s1] sm:$0xff]
    %v98 = vld [vmem:[%s1 + $0x8] sm:$0xff]
    %v99 = vld [vmem:[%s1 + $0x10] sm:$0xff]
    %v100 = vld [vmem:[%s1 + $0x18] sm:$0xff]
    %v101 = vld [vmem:[%s1 + $0x20] sm:$0xff]
    %v102 = vld [vmem:[%s1 + $0x28] sm:$0xff]
    %v103 = vld [vmem:[%s1 + $0x30] sm:$0xff]
    %v104 = vld [vmem:[%s1 + $0x38] sm:$0xff]
    %v105 = vld [vmem:[%s2] sm:$0x1]
    %v107 = vlaneseq
    %v108 = vshrl.u32 %v107, 7
    %v109 = vsub.s32 0, %v108
    %v110 = vrot.slane %v105, %v109
    %vm112 = vcmask 523264
    %v114 = vsel %vm112, %v33, 0
    %v117 = vsel %vm112, %v34, 0
    %v120 = vsel %vm112, %v35, 0
    %v123 = vsel %vm112, %v36, 0
    %v126 = vsel %vm112, %v37, 0
    %v129 = vsel %vm112, %v38, 0
    %v132 = vsel %vm112, %v39, 0
    %v135 = vsel %vm112, %v40, 0
    %v138 = vsel %vm112, %v41, 0
    %v141 = vsel %vm112, %v42, 0
    %v144 = vsel %vm112, %v43, 0
    %v147 = vsel %vm112, %v44, 0
    %v150 = vsel %vm112, %v45, 0
    %v153 = vsel %vm112, %v46, 0
    %v156 = vsel %vm112, %v47, 0
    %v159 = vsel %vm112, %v48, 0
    %v162 = vsel %vm112, %v49, 0
    %v165 = vsel %vm112, %v50, 0
    %v168 = vsel %vm112, %v51, 0
    %v171 = vsel %vm112, %v52, 0
    %v174 = vsel %vm112, %v53, 0
    %v177 = vsel %vm112, %v54, 0
    %v180 = vsel %vm112, %v55, 0
    %v183 = vsel %vm112, %v56, 0
    %v186 = vsel %vm112, %v57, 0
    %v189 = vsel %vm112, %v58, 0
    %v192 = vsel %vm112, %v59, 0
    %v195 = vsel %vm112, %v60, 0
    %v198 = vsel %vm112, %v61, 0
    %v201 = vsel %vm112, %v62, 0
    %v204 = vsel %vm112, %v63, 0
    %v207 = vsel %vm112, %v64, 0
    %v210 = vsel %vm112, %v65, 0
    %v213 = vsel %vm112, %v66, 0
    %v216 = vsel %vm112, %v67, 0
    %v219 = vsel %vm112, %v68, 0
    %v222 = vsel %vm112, %v69, 0
    %v225 = vsel %vm112, %v70, 0
    %v228 = vsel %vm112, %v71, 0
    %v231 = vsel %vm112, %v72, 0
    %v234 = vsel %vm112, %v73, 0
    %v237 = vsel %vm112, %v74, 0
    %v240 = vsel %vm112, %v75, 0
    %v243 = vsel %vm112, %v76, 0
    %v246 = vsel %vm112, %v77, 0
    %v249 = vsel %vm112, %v78, 0
    %v252 = vsel %vm112, %v79, 0
    %v255 = vsel %vm112, %v80, 0
    %v258 = vsel %vm112, %v81, 0
    %v261 = vsel %vm112, %v82, 0
    %v264 = vsel %vm112, %v83, 0
    %v267 = vsel %vm112, %v84, 0
    %v270 = vsel %vm112, %v85, 0
    %v273 = vsel %vm112, %v86, 0
    %v276 = vsel %vm112, %v87, 0
    %v279 = vsel %vm112, %v88, 0
    %v282 = vsel %vm112, %v89, 0
    %v285 = vsel %vm112, %v90, 0
    %v288 = vsel %vm112, %v91, 0
    %v291 = vsel %vm112, %v92, 0
    %v294 = vsel %vm112, %v93, 0
    %v297 = vsel %vm112, %v94, 0
    %v300 = vsel %vm112, %v95, 0
    %v303 = vsel %vm112, %v96, 0
    %305 = vmatprep.subr.mxu0 0.0
    %306 = vmatpush1.msra.mxu0 0.0
    %307 = vmatprep.subr.mxu0 0.0
    %308 = vmatpush1.msra.mxu0 0.0
    %309 = vmatprep.subr.mxu0 0.0
    %310 = vmatpush1.msra.mxu0 0.0
    %311 = vmatprep.subr.mxu0 0.0
    %312 = vmatpush1.msra.mxu0 0.0
    %313 = vmatprep.subr.mxu0 0.0
    %314 = vmatpush1.msra.mxu0 0.0
    %315 = vmatprep.subr.mxu0 0.0
    %316 = vmatpush1.msra.mxu0 0.0
    %317 = vmatprep.subr.mxu0 0.0
    %318 = vmatpush1.msra.mxu0 0.0
    %319 = vmatprep.subr.mxu0 0.0
    %320 = vmatpush1.msra.mxu0 0.0
    %321 = vmatprep.subr.mxu0 0.0
    %322 = vmatpush1.msra.mxu0 %v104
    %323 = vmatprep.subr.mxu0 0.0
    %324 = vmatpush1.msra.mxu0 %v103
    %325 = vmatprep.subr.mxu0 0.0
    %326 = vmatpush1.msra.mxu0 %v102
    %327 = vmatprep.subr.mxu0 0.0
    %328 = vmatpush1.msra.mxu0 %v101
    %329 = vmatprep.subr.mxu0 0.0
    %330 = vmatpush1.msra.mxu0 %v100
    %331 = vmatprep.subr.mxu0 0.0
    %332 = vmatpush1.msra.mxu0 %v99
    %333 = vmatprep.subr.mxu0 0.0
    %334 = vmatpush1.msra.mxu0 %v98
    %335 = vmatprep.subr.mxu0 0.0
    %336 = vmatpush1.msra.mxu0 %v97
    %337 = vmatprep.subr.mxu0 0.0
    %338 = vmatpush2.msra.mxu0 0.0
    %339 = vmatprep.subr.mxu0 0.0
    %340 = vmatpush2.msra.mxu0 0.0
    %341 = vmatprep.subr.mxu0 0.0
    %342 = vmatpush2.msra.mxu0 0.0
    %343 = vmatprep.subr.mxu0 0.0
    %344 = vmatpush2.msra.mxu0 0.0
    %345 = vmatprep.subr.mxu0 0.0
    %346 = vmatpush2.msra.mxu0 0.0
    %347 = vmatprep.subr.mxu0 0.0
    %348 = vmatpush2.msra.mxu0 0.0
    %349 = vmatprep.subr.mxu0 0.0
    %350 = vmatpush2.msra.mxu0 0.0
    %351 = vmatprep.subr.mxu0 0.0
    %352 = vmatpush2.msra.mxu0 0.0
    %353 = vmatprep.subr.mxu0 0.0
    %354 = vmatpush2.msra.mxu0 0.0
    %355 = vmatprep.subr.mxu0 0.0
    %356 = vmatpush2.msra.mxu0 0.0
    %357 = vmatprep.subr.mxu0 0.0
    %358 = vmatpush2.msra.mxu0 0.0
    %359 = vmatprep.subr.mxu0 0.0
    %360 = vmatpush2.msra.mxu0 0.0
    %361 = vmatprep.subr.mxu0 0.0
    %362 = vmatpush2.msra.mxu0 0.0
    %363 = vmatprep.subr.mxu0 0.0
    %364 = vmatpush2.msra.mxu0 0.0
    %365 = vmatprep.subr.mxu0 0.0
    %366 = vmatpush2.msra.mxu0 0.0
    %367 = vmatprep.subr.mxu0 0.0
    %368 = vmatpush2.msra.mxu0 0.0
    %369 = vmatprep.mubr.f32.mxu0 0.0
    %370 = vmatmul.mubr.f32.gmra.mxu0 %v114
    %v371 = vpop.f32.mrf.mxu0
    %v372 = vadd.f32 %v110, %v371
    %v373 = vpop.f32.mrf.mxu0
    %374 = vmatprep.mubr.f32.mxu0 0.0
    %375 = vmatmul.mubr.f32.gmra.mxu0 %v117
    %v376 = vpop.f32.mrf.mxu0
    %v377 = vadd.f32 %v110, %v376
    %v378 = vpop.f32.mrf.mxu0
    %379 = vmatprep.mubr.f32.mxu0 0.0
    %380 = vmatmul.mubr.f32.gmra.mxu0 %v120
    %v381 = vpop.f32.mrf.mxu0
    %v382 = vadd.f32 %v110, %v381
    %v383 = vpop.f32.mrf.mxu0
    %384 = vmatprep.mubr.f32.mxu0 0.0
    %385 = vmatmul.mubr.f32.gmra.mxu0 %v123
    %v386 = vpop.f32.mrf.mxu0
    %v387 = vadd.f32 %v110, %v386
    %v388 = vpop.f32.mrf.mxu0
    %389 = vmatprep.mubr.f32.mxu0 0.0
    %390 = vmatmul.mubr.f32.gmra.mxu0 %v126
    %v391 = vpop.f32.mrf.mxu0
    %v392 = vadd.f32 %v110, %v391
    %v393 = vpop.f32.mrf.mxu0
    %394 = vmatprep.mubr.f32.mxu0 0.0
    %395 = vmatmul.mubr.f32.gmra.mxu0 %v129
    %v396 = vpop.f32.mrf.mxu0
    %v397 = vadd.f32 %v110, %v396
    %v398 = vpop.f32.mrf.mxu0
    %399 = vmatprep.mubr.f32.mxu0 0.0
    %400 = vmatmul.mubr.f32.gmra.mxu0 %v132
    %v401 = vpop.f32.mrf.mxu0
    %v402 = vadd.f32 %v110, %v401
    %v403 = vpop.f32.mrf.mxu0
    %404 = vmatprep.mubr.f32.mxu0 0.0
    %405 = vmatmul.mubr.f32.gmra.mxu0 %v135
    %v406 = vpop.f32.mrf.mxu0
    %v407 = vadd.f32 %v110, %v406
    %v408 = vpop.f32.mrf.mxu0
    %409 = vmatprep.mubr.f32.mxu0 0.0
    %410 = vmatmul.mubr.f32.gmra.mxu0 %v138
    %v411 = vpop.f32.mrf.mxu0
    %v412 = vadd.f32 %v110, %v411
    %v413 = vpop.f32.mrf.mxu0
    %414 = vmatprep.mubr.f32.mxu0 0.0
    %415 = vmatmul.mubr.f32.gmra.mxu0 %v141
    %v416 = vpop.f32.mrf.mxu0
    %v417 = vadd.f32 %v110, %v416
    %v418 = vpop.f32.mrf.mxu0
    %419 = vmatprep.mubr.f32.mxu0 0.0
    %420 = vmatmul.mubr.f32.gmra.mxu0 %v144
    %v421 = vpop.f32.mrf.mxu0
    %v422 = vadd.f32 %v110, %v421
    %v423 = vpop.f32.mrf.mxu0
    %424 = vmatprep.mubr.f32.mxu0 0.0
    %425 = vmatmul.mubr.f32.gmra.mxu0 %v147
    %v426 = vpop.f32.mrf.mxu0
    %v427 = vadd.f32 %v110, %v426
    %v428 = vpop.f32.mrf.mxu0
    %429 = vmatprep.mubr.f32.mxu0 0.0
    %430 = vmatmul.mubr.f32.gmra.mxu0 %v150
    %v431 = vpop.f32.mrf.mxu0
    %v432 = vadd.f32 %v110, %v431
    %v433 = vpop.f32.mrf.mxu0
    %434 = vmatprep.mubr.f32.mxu0 0.0
    %435 = vmatmul.mubr.f32.gmra.mxu0 %v153
    %v436 = vpop.f32.mrf.mxu0
    %v437 = vadd.f32 %v110, %v436
    %v438 = vpop.f32.mrf.mxu0
    %439 = vmatprep.mubr.f32.mxu0 0.0
    %440 = vmatmul.mubr.f32.gmra.mxu0 %v156
    %v441 = vpop.f32.mrf.mxu0
    %v442 = vadd.f32 %v110, %v441
    %v443 = vpop.f32.mrf.mxu0
    %444 = vmatprep.mubr.f32.mxu0 0.0
    %445 = vmatmul.mubr.f32.gmra.mxu0 %v159
    %v446 = vpop.f32.mrf.mxu0
    %v447 = vadd.f32 %v110, %v446
    %v448 = vpop.f32.mrf.mxu0
    %449 = vmatprep.mubr.f32.mxu0 0.0
    %450 = vmatmul.mubr.f32.gmra.mxu0 %v162
    %v451 = vpop.f32.mrf.mxu0
    %v452 = vadd.f32 %v110, %v451
    %v453 = vpop.f32.mrf.mxu0
    %454 = vmatprep.mubr.f32.mxu0 0.0
    %455 = vmatmul.mubr.f32.gmra.mxu0 %v165
    %v456 = vpop.f32.mrf.mxu0
    %v457 = vadd.f32 %v110, %v456
    %v458 = vpop.f32.mrf.mxu0
    %459 = vmatprep.mubr.f32.mxu0 0.0
    %460 = vmatmul.mubr.f32.gmra.mxu0 %v168
    %v461 = vpop.f32.mrf.mxu0
    %v462 = vadd.f32 %v110, %v461
    %v463 = vpop.f32.mrf.mxu0
    %464 = vmatprep.mubr.f32.mxu0 0.0
    %465 = vmatmul.mubr.f32.gmra.mxu0 %v171
    %v466 = vpop.f32.mrf.mxu0
    %v467 = vadd.f32 %v110, %v466
    %v468 = vpop.f32.mrf.mxu0
    %469 = vmatprep.mubr.f32.mxu0 0.0
    %470 = vmatmul.mubr.f32.gmra.mxu0 %v174
    %v471 = vpop.f32.mrf.mxu0
    %v472 = vadd.f32 %v110, %v471
    %v473 = vpop.f32.mrf.mxu0
    %474 = vmatprep.mubr.f32.mxu0 0.0
    %475 = vmatmul.mubr.f32.gmra.mxu0 %v177
    %v476 = vpop.f32.mrf.mxu0
    %v477 = vadd.f32 %v110, %v476
    %v478 = vpop.f32.mrf.mxu0
    %479 = vmatprep.mubr.f32.mxu0 0.0
    %480 = vmatmul.mubr.f32.gmra.mxu0 %v180
    %v481 = vpop.f32.mrf.mxu0
    %v482 = vadd.f32 %v110, %v481
    %v483 = vpop.f32.mrf.mxu0
    %484 = vmatprep.mubr.f32.mxu0 0.0
    %485 = vmatmul.mubr.f32.gmra.mxu0 %v183
    %v486 = vpop.f32.mrf.mxu0
    %v487 = vadd.f32 %v110, %v486
    %v488 = vpop.f32.mrf.mxu0
    %489 = vmatprep.mubr.f32.mxu0 0.0
    %490 = vmatmul.mubr.f32.gmra.mxu0 %v186
    %v491 = vpop.f32.mrf.mxu0
    %v492 = vadd.f32 %v110, %v491
    %v493 = vpop.f32.mrf.mxu0
    %494 = vmatprep.mubr.f32.mxu0 0.0
    %495 = vmatmul.mubr.f32.gmra.mxu0 %v189
    %v496 = vpop.f32.mrf.mxu0
    %v497 = vadd.f32 %v110, %v496
    %v498 = vpop.f32.mrf.mxu0
    %499 = vmatprep.mubr.f32.mxu0 0.0
    %500 = vmatmul.mubr.f32.gmra.mxu0 %v192
    %v501 = vpop.f32.mrf.mxu0
    %v502 = vadd.f32 %v110, %v501
    %v503 = vpop.f32.mrf.mxu0
    %504 = vmatprep.mubr.f32.mxu0 0.0
    %505 = vmatmul.mubr.f32.gmra.mxu0 %v195
    %v506 = vpop.f32.mrf.mxu0
    %v507 = vadd.f32 %v110, %v506
    %v508 = vpop.f32.mrf.mxu0
    %509 = vmatprep.mubr.f32.mxu0 0.0
    %510 = vmatmul.mubr.f32.gmra.mxu0 %v198
    %v511 = vpop.f32.mrf.mxu0
    %v512 = vadd.f32 %v110, %v511
    %v513 = vpop.f32.mrf.mxu0
    %514 = vmatprep.mubr.f32.mxu0 0.0
    %515 = vmatmul.mubr.f32.gmra.mxu0 %v201
    %v516 = vpop.f32.mrf.mxu0
    %v517 = vadd.f32 %v110, %v516
    %v518 = vpop.f32.mrf.mxu0
    %519 = vmatprep.mubr.f32.mxu0 0.0
    %520 = vmatmul.mubr.f32.gmra.mxu0 %v204
    %v521 = vpop.f32.mrf.mxu0
    %v522 = vadd.f32 %v110, %v521
    %v523 = vpop.f32.mrf.mxu0
    %524 = vmatprep.mubr.f32.mxu0 0.0
    %525 = vmatmul.mubr.f32.gmra.mxu0 %v207
    %v526 = vpop.f32.mrf.mxu0
    %v527 = vadd.f32 %v110, %v526
    %v528 = vpop.f32.mrf.mxu0
    %529 = vmatprep.mubr.f32.mxu0 0.0
    %530 = vmatmul.mubr.f32.gmra.mxu0 %v210
    %v531 = vpop.f32.mrf.mxu0
    %v532 = vadd.f32 %v110, %v531
    %v533 = vpop.f32.mrf.mxu0
    %534 = vmatprep.mubr.f32.mxu0 0.0
    %535 = vmatmul.mubr.f32.gmra.mxu0 %v213
    %v536 = vpop.f32.mrf.mxu0
    %v537 = vadd.f32 %v110, %v536
    %v538 = vpop.f32.mrf.mxu0
    %539 = vmatprep.mubr.f32.mxu0 0.0
    %540 = vmatmul.mubr.f32.gmra.mxu0 %v216
    %v541 = vpop.f32.mrf.mxu0
    %v542 = vadd.f32 %v110, %v541
    %v543 = vpop.f32.mrf.mxu0
    %544 = vmatprep.mubr.f32.mxu0 0.0
    %545 = vmatmul.mubr.f32.gmra.mxu0 %v219
    %v546 = vpop.f32.mrf.mxu0
    %v547 = vadd.f32 %v110, %v546
    %v548 = vpop.f32.mrf.mxu0
    %549 = vmatprep.mubr.f32.mxu0 0.0
    %550 = vmatmul.mubr.f32.gmra.mxu0 %v222
    %v551 = vpop.f32.mrf.mxu0
    %v552 = vadd.f32 %v110, %v551
    %v553 = vpop.f32.mrf.mxu0
    %554 = vmatprep.mubr.f32.mxu0 0.0
    %555 = vmatmul.mubr.f32.gmra.mxu0 %v225
    %v556 = vpop.f32.mrf.mxu0
    %v557 = vadd.f32 %v110, %v556
    %v558 = vpop.f32.mrf.mxu0
    %559 = vmatprep.mubr.f32.mxu0 0.0
    %560 = vmatmul.mubr.f32.gmra.mxu0 %v228
    %v561 = vpop.f32.mrf.mxu0
    %v562 = vadd.f32 %v110, %v561
    %v563 = vpop.f32.mrf.mxu0
    %564 = vmatprep.mubr.f32.mxu0 0.0
    %565 = vmatmul.mubr.f32.gmra.mxu0 %v231
    %v566 = vpop.f32.mrf.mxu0
    %v567 = vadd.f32 %v110, %v566
    %v568 = vpop.f32.mrf.mxu0
    %569 = vmatprep.mubr.f32.mxu0 0.0
    %570 = vmatmul.mubr.f32.gmra.mxu0 %v234
    %v571 = vpop.f32.mrf.mxu0
    %v572 = vadd.f32 %v110, %v571
    %v573 = vpop.f32.mrf.mxu0
    %574 = vmatprep.mubr.f32.mxu0 0.0
    %575 = vmatmul.mubr.f32.gmra.mxu0 %v237
    %v576 = vpop.f32.mrf.mxu0
    %v577 = vadd.f32 %v110, %v576
    %v578 = vpop.f32.mrf.mxu0
    %579 = vmatprep.mubr.f32.mxu0 0.0
    %580 = vmatmul.mubr.f32.gmra.mxu0 %v240
    %v581 = vpop.f32.mrf.mxu0
    %v582 = vadd.f32 %v110, %v581
    %v583 = vpop.f32.mrf.mxu0
    %584 = vmatprep.mubr.f32.mxu0 0.0
    %585 = vmatmul.mubr.f32.gmra.mxu0 %v243
    %v586 = vpop.f32.mrf.mxu0
    %v587 = vadd.f32 %v110, %v586
    %v588 = vpop.f32.mrf.mxu0
    %589 = vmatprep.mubr.f32.mxu0 0.0
    %590 = vmatmul.mubr.f32.gmra.mxu0 %v246
    %v591 = vpop.f32.mrf.mxu0
    %v592 = vadd.f32 %v110, %v591
    %v593 = vpop.f32.mrf.mxu0
    %594 = vmatprep.mubr.f32.mxu0 0.0
    %595 = vmatmul.mubr.f32.gmra.mxu0 %v249
    %v596 = vpop.f32.mrf.mxu0
    %v597 = vadd.f32 %v110, %v596
    %v598 = vpop.f32.mrf.mxu0
    %599 = vmatprep.mubr.f32.mxu0 0.0
    %600 = vmatmul.mubr.f32.gmra.mxu0 %v252
    %v601 = vpop.f32.mrf.mxu0
    %v602 = vadd.f32 %v110, %v601
    %v603 = vpop.f32.mrf.mxu0
    %604 = vmatprep.mubr.f32.mxu0 0.0
    %605 = vmatmul.mubr.f32.gmra.mxu0 %v255
    %v606 = vpop.f32.mrf.mxu0
    %v607 = vadd.f32 %v110, %v606
    %v608 = vpop.f32.mrf.mxu0
    %609 = vmatprep.mubr.f32.mxu0 0.0
    %610 = vmatmul.mubr.f32.gmra.mxu0 %v258
    %v611 = vpop.f32.mrf.mxu0
    %v612 = vadd.f32 %v110, %v611
    %v613 = vpop.f32.mrf.mxu0
    %614 = vmatprep.mubr.f32.mxu0 0.0
    %615 = vmatmul.mubr.f32.gmra.mxu0 %v261
    %v616 = vpop.f32.mrf.mxu0
    %v617 = vadd.f32 %v110, %v616
    %v618 = vpop.f32.mrf.mxu0
    %619 = vmatprep.mubr.f32.mxu0 0.0
    %620 = vmatmul.mubr.f32.gmra.mxu0 %v264
    %v621 = vpop.f32.mrf.mxu0
    %v622 = vadd.f32 %v110, %v621
    %v623 = vpop.f32.mrf.mxu0
    %624 = vmatprep.mubr.f32.mxu0 0.0
    %625 = vmatmul.mubr.f32.gmra.mxu0 %v267
    %v626 = vpop.f32.mrf.mxu0
    %v627 = vadd.f32 %v110, %v626
    %v628 = vpop.f32.mrf.mxu0
    %629 = vmatprep.mubr.f32.mxu0 0.0
    %630 = vmatmul.mubr.f32.gmra.mxu0 %v270
    %v631 = vpop.f32.mrf.mxu0
    %v632 = vadd.f32 %v110, %v631
    %v633 = vpop.f32.mrf.mxu0
    %634 = vmatprep.mubr.f32.mxu0 0.0
    %635 = vmatmul.mubr.f32.gmra.mxu0 %v273
    %v636 = vpop.f32.mrf.mxu0
    %v637 = vadd.f32 %v110, %v636
    %v638 = vpop.f32.mrf.mxu0
    %639 = vmatprep.mubr.f32.mxu0 0.0
    %640 = vmatmul.mubr.f32.gmra.mxu0 %v276
    %v641 = vpop.f32.mrf.mxu0
    %v642 = vadd.f32 %v110, %v641
    %v643 = vpop.f32.mrf.mxu0
    %644 = vmatprep.mubr.f32.mxu0 0.0
    %645 = vmatmul.mubr.f32.gmra.mxu0 %v279
    %v646 = vpop.f32.mrf.mxu0
    %v647 = vadd.f32 %v110, %v646
    %v648 = vpop.f32.mrf.mxu0
    %649 = vmatprep.mubr.f32.mxu0 0.0
    %650 = vmatmul.mubr.f32.gmra.mxu0 %v282
    %v651 = vpop.f32.mrf.mxu0
    %v652 = vadd.f32 %v110, %v651
    %v653 = vpop.f32.mrf.mxu0
    %654 = vmatprep.mubr.f32.mxu0 0.0
    %655 = vmatmul.mubr.f32.gmra.mxu0 %v285
    %v656 = vpop.f32.mrf.mxu0
    %v657 = vadd.f32 %v110, %v656
    %v658 = vpop.f32.mrf.mxu0
    %659 = vmatprep.mubr.f32.mxu0 0.0
    %660 = vmatmul.mubr.f32.gmra.mxu0 %v288
    %v661 = vpop.f32.mrf.mxu0
    %v662 = vadd.f32 %v110, %v661
    %v663 = vpop.f32.mrf.mxu0
    %664 = vmatprep.mubr.f32.mxu0 0.0
    %665 = vmatmul.mubr.f32.gmra.mxu0 %v291
    %v666 = vpop.f32.mrf.mxu0
    %v667 = vadd.f32 %v110, %v666
    %v668 = vpop.f32.mrf.mxu0
    %669 = vmatprep.mubr.f32.mxu0 0.0
    %670 = vmatmul.mubr.f32.gmra.mxu0 %v294
    %v671 = vpop.f32.mrf.mxu0
    %v672 = vadd.f32 %v110, %v671
    %v673 = vpop.f32.mrf.mxu0
    %674 = vmatprep.mubr.f32.mxu0 0.0
    %675 = vmatmul.mubr.f32.gmra.mxu0 %v297
    %v676 = vpop.f32.mrf.mxu0
    %v677 = vadd.f32 %v110, %v676
    %v678 = vpop.f32.mrf.mxu0
    %679 = vmatprep.mubr.f32.mxu0 0.0
    %680 = vmatmul.mubr.f32.gmra.mxu0 %v300
    %v681 = vpop.f32.mrf.mxu0
    %v682 = vadd.f32 %v110, %v681
    %v683 = vpop.f32.mrf.mxu0
    %684 = vmatprep.mubr.f32.mxu0 0.0
    %685 = vmatmul.mubr.f32.gmra.mxu0 %v303
    %v686 = vpop.f32.mrf.mxu0
    %v687 = vadd.f32 %v110, %v686
    %v688 = vpop.f32.mrf.mxu0
    %689 = vdwg.mxu0
    %vm690 = vcmp.gt.f32.partialorder %v372, 0.0
    %vm691 = vcmp.gt.f32.partialorder %v377, 0.0
    %vm692 = vcmp.gt.f32.partialorder %v382, 0.0
    %vm693 = vcmp.gt.f32.partialorder %v387, 0.0
    %vm694 = vcmp.gt.f32.partialorder %v392, 0.0
    %vm695 = vcmp.gt.f32.partialorder %v397, 0.0
    %vm696 = vcmp.gt.f32.partialorder %v402, 0.0
    %vm697 = vcmp.gt.f32.partialorder %v407, 0.0
    %vm698 = vcmp.gt.f32.partialorder %v412, 0.0
    %vm699 = vcmp.gt.f32.partialorder %v417, 0.0
    %vm700 = vcmp.gt.f32.partialorder %v422, 0.0
    %vm701 = vcmp.gt.f32.partialorder %v427, 0.0
    %vm702 = vcmp.gt.f32.partialorder %v432, 0.0
    %vm703 = vcmp.gt.f32.partialorder %v437, 0.0
    %vm704 = vcmp.gt.f32.partialorder %v442, 0.0
    %vm705 = vcmp.gt.f32.partialorder %v447, 0.0
    %vm706 = vcmp.gt.f32.partialorder %v452, 0.0
    %vm707 = vcmp.gt.f32.partialorder %v457, 0.0
    %vm708 = vcmp.gt.f32.partialorder %v462, 0.0
    %vm709 = vcmp.gt.f32.partialorder %v467, 0.0
    %vm710 = vcmp.gt.f32.partialorder %v472, 0.0
    %vm711 = vcmp.gt.f32.partialorder %v477, 0.0
    %vm712 = vcmp.gt.f32.partialorder %v482, 0.0
    %vm713 = vcmp.gt.f32.partialorder %v487, 0.0
    %vm714 = vcmp.gt.f32.partialorder %v492, 0.0
    %vm715 = vcmp.gt.f32.partialorder %v497, 0.0
    %vm716 = vcmp.gt.f32.partialorder %v502, 0.0
    %vm717 = vcmp.gt.f32.partialorder %v507, 0.0
    %vm718 = vcmp.gt.f32.partialorder %v512, 0.0
    %vm719 = vcmp.gt.f32.partialorder %v517, 0.0
    %vm720 = vcmp.gt.f32.partialorder %v522, 0.0
    %vm721 = vcmp.gt.f32.partialorder %v527, 0.0
    %vm722 = vcmp.gt.f32.partialorder %v532, 0.0
    %vm723 = vcmp.gt.f32.partialorder %v537, 0.0
    %vm724 = vcmp.gt.f32.partialorder %v542, 0.0
    %vm725 = vcmp.gt.f32.partialorder %v547, 0.0
    %vm726 = vcmp.gt.f32.partialorder %v552, 0.0
    %vm727 = vcmp.gt.f32.partialorder %v557, 0.0
    %vm728 = vcmp.gt.f32.partialorder %v562, 0.0
    %vm729 = vcmp.gt.f32.partialorder %v567, 0.0
    %vm730 = vcmp.gt.f32.partialorder %v572, 0.0
    %vm731 = vcmp.gt.f32.partialorder %v577, 0.0
    %vm732 = vcmp.gt.f32.partialorder %v582, 0.0
    %vm733 = vcmp.gt.f32.partialorder %v587, 0.0
    %vm734 = vcmp.gt.f32.partialorder %v592, 0.0
    %vm735 = vcmp.gt.f32.partialorder %v597, 0.0
    %vm736 = vcmp.gt.f32.partialorder %v602, 0.0
    %vm737 = vcmp.gt.f32.partialorder %v607, 0.0
    %vm738 = vcmp.gt.f32.partialorder %v612, 0.0
    %vm739 = vcmp.gt.f32.partialorder %v617, 0.0
    %vm740 = vcmp.gt.f32.partialorder %v622, 0.0
    %vm741 = vcmp.gt.f32.partialorder %v627, 0.0
    %vm742 = vcmp.gt.f32.partialorder %v632, 0.0
    %vm743 = vcmp.gt.f32.partialorder %v637, 0.0
    %vm744 = vcmp.gt.f32.partialorder %v642, 0.0
    %vm745 = vcmp.gt.f32.partialorder %v647, 0.0
    %vm746 = vcmp.gt.f32.partialorder %v652, 0.0
    %vm747 = vcmp.gt.f32.partialorder %v657, 0.0
    %vm748 = vcmp.gt.f32.partialorder %v662, 0.0
    %vm749 = vcmp.gt.f32.partialorder %v667, 0.0
    %vm750 = vcmp.gt.f32.partialorder %v672, 0.0
    %vm751 = vcmp.gt.f32.partialorder %v677, 0.0
    %vm752 = vcmp.gt.f32.partialorder %v682, 0.0
    %vm753 = vcmp.gt.f32.partialorder %v687, 0.0
    %v754 = vmul.f32 %v372, 0.2
    %v755 = vmul.f32 %v377, 0.2
    %v756 = vmul.f32 %v382, 0.2
    %v757 = vmul.f32 %v387, 0.2
    %v758 = vmul.f32 %v392, 0.2
    %v759 = vmul.f32 %v397, 0.2
    %v760 = vmul.f32 %v402, 0.2
    %v761 = vmul.f32 %v407, 0.2
    %v762 = vmul.f32 %v412, 0.2
    %v763 = vmul.f32 %v417, 0.2
    %v764 = vmul.f32 %v422, 0.2
    %v765 = vmul.f32 %v427, 0.2
    %v766 = vmul.f32 %v432, 0.2
    %v767 = vmul.f32 %v437, 0.2
    %v768 = vmul.f32 %v442, 0.2
    %v769 = vmul.f32 %v447, 0.2
    %v770 = vmul.f32 %v452, 0.2
    %v771 = vmul.f32 %v457, 0.2
    %v772 = vmul.f32 %v462, 0.2
    %v773 = vmul.f32 %v467, 0.2
    %v774 = vmul.f32 %v472, 0.2
    %v775 = vmul.f32 %v477, 0.2
    %v776 = vmul.f32 %v482, 0.2
    %v777 = vmul.f32 %v487, 0.2
    %v778 = vmul.f32 %v492, 0.2
    %v779 = vmul.f32 %v497, 0.2
    %v780 = vmul.f32 %v502, 0.2
    %v781 = vmul.f32 %v507, 0.2
    %v782 = vmul.f32 %v512, 0.2
    %v783 = vmul.f32 %v517, 0.2
    %v784 = vmul.f32 %v522, 0.2
    %v785 = vmul.f32 %v527, 0.2
    %v786 = vmul.f32 %v532, 0.2
    %v787 = vmul.f32 %v537, 0.2
    %v788 = vmul.f32 %v542, 0.2
    %v789 = vmul.f32 %v547, 0.2
    %v790 = vmul.f32 %v552, 0.2
    %v791 = vmul.f32 %v557, 0.2
    %v792 = vmul.f32 %v562, 0.2
    %v793 = vmul.f32 %v567, 0.2
    %v794 = vmul.f32 %v572, 0.2
    %v795 = vmul.f32 %v577, 0.2
    %v796 = vmul.f32 %v582, 0.2
    %v797 = vmul.f32 %v587, 0.2
    %v798 = vmul.f32 %v592, 0.2
    %v799 = vmul.f32 %v597, 0.2
    %v800 = vmul.f32 %v602, 0.2
    %v801 = vmul.f32 %v607, 0.2
    %v802 = vmul.f32 %v612, 0.2
    %v803 = vmul.f32 %v617, 0.2
    %v804 = vmul.f32 %v622, 0.2
    %v805 = vmul.f32 %v627, 0.2
    %v806 = vmul.f32 %v632, 0.2
    %v807 = vmul.f32 %v637, 0.2
    %v808 = vmul.f32 %v642, 0.2
    %v809 = vmul.f32 %v647, 0.2
    %v810 = vmul.f32 %v652, 0.2
    %v811 = vmul.f32 %v657, 0.2
    %v812 = vmul.f32 %v662, 0.2
    %v813 = vmul.f32 %v667, 0.2
    %v814 = vmul.f32 %v672, 0.2
    %v815 = vmul.f32 %v677, 0.2
    %v816 = vmul.f32 %v682, 0.2
    %v817 = vmul.f32 %v687, 0.2
    %v818 = vsel %vm690, %v372, %v754
    %v819 = vsel %vm691, %v377, %v755
    %v820 = vsel %vm692, %v382, %v756
    %v821 = vsel %vm693, %v387, %v757
    %v822 = vsel %vm694, %v392, %v758
    %v823 = vsel %vm695, %v397, %v759
    %v824 = vsel %vm696, %v402, %v760
    %v825 = vsel %vm697, %v407, %v761
    %v826 = vsel %vm698, %v412, %v762
    %v827 = vsel %vm699, %v417, %v763
    %v828 = vsel %vm700, %v422, %v764
    %v829 = vsel %vm701, %v427, %v765
    %v830 = vsel %vm702, %v432, %v766
    %v831 = vsel %vm703, %v437, %v767
    %v832 = vsel %vm704, %v442, %v768
    %v833 = vsel %vm705, %v447, %v769
    %v834 = vsel %vm706, %v452, %v770
    %v835 = vsel %vm707, %v457, %v771
    %v836 = vsel %vm708, %v462, %v772
    %v837 = vsel %vm709, %v467, %v773
    %v838 = vsel %vm710, %v472, %v774
    %v839 = vsel %vm711, %v477, %v775
    %v840 = vsel %vm712, %v482, %v776
    %v841 = vsel %vm713, %v487, %v777
    %v842 = vsel %vm714, %v492, %v778
    %v843 = vsel %vm715, %v497, %v779
    %v844 = vsel %vm716, %v502, %v780
    %v845 = vsel %vm717, %v507, %v781
    %v846 = vsel %vm718, %v512, %v782
    %v847 = vsel %vm719, %v517, %v783
    %v848 = vsel %vm720, %v522, %v784
    %v849 = vsel %vm721, %v527, %v785
    %v850 = vsel %vm722, %v532, %v786
    %v851 = vsel %vm723, %v537, %v787
    %v852 = vsel %vm724, %v542, %v788
    %v853 = vsel %vm725, %v547, %v789
    %v854 = vsel %vm726, %v552, %v790
    %v855 = vsel %vm727, %v557, %v791
    %v856 = vsel %vm728, %v562, %v792
    %v857 = vsel %vm729, %v567, %v793
    %v858 = vsel %vm730, %v572, %v794
    %v859 = vsel %vm731, %v577, %v795
    %v860 = vsel %vm732, %v582, %v796
    %v861 = vsel %vm733, %v587, %v797
    %v862 = vsel %vm734, %v592, %v798
    %v863 = vsel %vm735, %v597, %v799
    %v864 = vsel %vm736, %v602, %v800
    %v865 = vsel %vm737, %v607, %v801
    %v866 = vsel %vm738, %v612, %v802
    %v867 = vsel %vm739, %v617, %v803
    %v868 = vsel %vm740, %v622, %v804
    %v869 = vsel %vm741, %v627, %v805
    %v870 = vsel %vm742, %v632, %v806
    %v871 = vsel %vm743, %v637, %v807
    %v872 = vsel %vm744, %v642, %v808
    %v873 = vsel %vm745, %v647, %v809
    %v874 = vsel %vm746, %v652, %v810
    %v875 = vsel %vm747, %v657, %v811
    %v876 = vsel %vm748, %v662, %v812
    %v877 = vsel %vm749, %v667, %v813
    %v878 = vsel %vm750, %v672, %v814
    %v879 = vsel %vm751, %v677, %v815
    %v880 = vsel %vm752, %v682, %v816
    %v881 = vsel %vm753, %v687, %v817
    %v882 = vpack.c.bf16 %v819, %v818
    %v883 = vpack.c.bf16 %v821, %v820
    %v884 = vpack.c.bf16 %v823, %v822
    %v885 = vpack.c.bf16 %v825, %v824
    %v886 = vpack.c.bf16 %v827, %v826
    %v887 = vpack.c.bf16 %v829, %v828
    %v888 = vpack.c.bf16 %v831, %v830
    %v889 = vpack.c.bf16 %v833, %v832
    %v890 = vpack.c.bf16 %v835, %v834
    %v891 = vpack.c.bf16 %v837, %v836
    %v892 = vpack.c.bf16 %v839, %v838
    %v893 = vpack.c.bf16 %v841, %v840
    %v894 = vpack.c.bf16 %v843, %v842
    %v895 = vpack.c.bf16 %v845, %v844
    %v896 = vpack.c.bf16 %v847, %v846
    %v897 = vpack.c.bf16 %v849, %v848
    %v898 = vpack.c.bf16 %v851, %v850
    %v899 = vpack.c.bf16 %v853, %v852
    %v900 = vpack.c.bf16 %v855, %v854
    %v901 = vpack.c.bf16 %v857, %v856
    %v902 = vpack.c.bf16 %v859, %v858
    %v903 = vpack.c.bf16 %v861, %v860
    %v904 = vpack.c.bf16 %v863, %v862
    %v905 = vpack.c.bf16 %v865, %v864
    %v906 = vpack.c.bf16 %v867, %v866
    %v907 = vpack.c.bf16 %v869, %v868
    %v908 = vpack.c.bf16 %v871, %v870
    %v909 = vpack.c.bf16 %v873, %v872
    %v910 = vpack.c.bf16 %v875, %v874
    %v911 = vpack.c.bf16 %v877, %v876
    %v912 = vpack.c.bf16 %v879, %v878
    %v913 = vpack.c.bf16 %v881, %v880
    %v914 = vld [vmem:[%s3] sm:$0xf]
    %v915 = vld [vmem:[%s3 + $0x4] sm:$0xf]
    %v916 = vld [vmem:[%s3 + $0x8] sm:$0xf]
    %v917 = vld [vmem:[%s3 + $0xc] sm:$0xf]
    %v918 = vld [vmem:[%s3 + $0x10] sm:$0xf]
    %v919 = vld [vmem:[%s3 + $0x14] sm:$0xf]
    %v920 = vld [vmem:[%s3 + $0x18] sm:$0xf]
    %v921 = vld [vmem:[%s3 + $0x1c] sm:$0xf]
    %v922 = vld [vmem:[%s3 + $0x20] sm:$0xf]
    %v923 = vld [vmem:[%s3 + $0x24] sm:$0xf]
    %v924 = vld [vmem:[%s3 + $0x28] sm:$0xf]
    %v925 = vld [vmem:[%s3 + $0x2c] sm:$0xf]
    %v926 = vld [vmem:[%s3 + $0x30] sm:$0xf]
    %v927 = vld [vmem:[%s3 + $0x34] sm:$0xf]
    %v928 = vld [vmem:[%s3 + $0x38] sm:$0xf]
    %v929 = vld [vmem:[%s3 + $0x3c] sm:$0xf]
    %v930 = vld [vmem:[%s4] sm:$0x1]
    %v932 = vlaneseq
    %v933 = vshrl.u32 %v932, 7
    %v934 = vsub.s32 0, %v933
    %v935 = vrot.slane %v930, %v934
    %v953 = vunpack.c.l.b16 %v914
    %v954 = vunpack.c.l.b16 %v915
    %v955 = vunpack.c.l.b16 %v916
    %v956 = vunpack.c.l.b16 %v917
    %v957 = vunpack.c.l.b16 %v918
    %v958 = vunpack.c.l.b16 %v919
    %v959 = vunpack.c.l.b16 %v920
    %v960 = vunpack.c.l.b16 %v921
    %v961 = vunpack.c.l.b16 %v922
    %v962 = vunpack.c.l.b16 %v923
    %v963 = vunpack.c.l.b16 %v924
    %v964 = vunpack.c.l.b16 %v925
    %v965 = vunpack.c.l.b16 %v926
    %v966 = vunpack.c.l.b16 %v927
    %v967 = vunpack.c.l.b16 %v928
    %v968 = vunpack.c.l.b16 %v929
    %v969 = vpack.c.b16 %v954, %v953
    %v970 = vpack.c.b16 %v956, %v955
    %v971 = vpack.c.b16 %v958, %v957
    %v972 = vpack.c.b16 %v960, %v959
    %v973 = vpack.c.b16 %v962, %v961
    %v974 = vpack.c.b16 %v964, %v963
    %v975 = vpack.c.b16 %v966, %v965
    %v976 = vpack.c.b16 %v968, %v967
    %985 = vmatprep.subr.bf16.mxu0 0
    %986 = vmatpush1.bf16.msra.mxu0 %v976
    %987 = vmatprep.subr.bf16.mxu0 0
    %988 = vmatpush1.bf16.msra.mxu0 %v975
    %989 = vmatprep.subr.bf16.mxu0 0
    %990 = vmatpush1.bf16.msra.mxu0 %v974
    %991 = vmatprep.subr.bf16.mxu0 0
    %992 = vmatpush1.bf16.msra.mxu0 %v973
    %993 = vmatprep.subr.bf16.mxu0 0
    %994 = vmatpush1.bf16.msra.mxu0 %v972
    %995 = vmatprep.subr.bf16.mxu0 0
    %996 = vmatpush1.bf16.msra.mxu0 %v971
    %997 = vmatprep.subr.bf16.mxu0 0
    %998 = vmatpush1.bf16.msra.mxu0 %v970
    %999 = vmatprep.subr.bf16.mxu0 0
    %1000 = vmatpush1.bf16.msra.mxu0 %v969
    %1001 = vmatprep.subr.bf16.mxu0 0
    %1002 = vmatpush2.bf16.msra.mxu0 0
    %1003 = vmatprep.subr.bf16.mxu0 0
    %1004 = vmatpush2.bf16.msra.mxu0 0
    %1005 = vmatprep.subr.bf16.mxu0 0
    %1006 = vmatpush2.bf16.msra.mxu0 0
    %1007 = vmatprep.subr.bf16.mxu0 0
    %1008 = vmatpush2.bf16.msra.mxu0 0
    %1009 = vmatprep.subr.bf16.mxu0 0
    %1010 = vmatpush2.bf16.msra.mxu0 0
    %1011 = vmatprep.subr.bf16.mxu0 0
    %1012 = vmatpush2.bf16.msra.mxu0 0
    %1013 = vmatprep.subr.bf16.mxu0 0
    %1014 = vmatpush2.bf16.msra.mxu0 0
    %1015 = vmatprep.subr.bf16.mxu0 0
    %1016 = vmatpush2.bf16.msra.mxu0 0
    %1017 = vmatprep.mubr.bf16.mxu0 0
    %1018 = vmatmul.mubr.bf16.gmra.mxu0 %v882
    %v1019 = vpop.f32.mrf.mxu0
    %v1020 = vadd.f32 %v935, %v1019
    %v1021 = vpop.f32.mrf.mxu0
    %v1022 = vpop.f32.mrf.mxu0
    %v1023 = vadd.f32 %v935, %v1022
    %v1024 = vpop.f32.mrf.mxu0
    %1025 = vmatprep.mubr.bf16.mxu0 0
    %1026 = vmatmul.mubr.bf16.gmra.mxu0 %v883
    %v1027 = vpop.f32.mrf.mxu0
    %v1028 = vadd.f32 %v935, %v1027
    %v1029 = vpop.f32.mrf.mxu0
    %v1030 = vpop.f32.mrf.mxu0
    %v1031 = vadd.f32 %v935, %v1030
    %v1032 = vpop.f32.mrf.mxu0
    %1033 = vmatprep.mubr.bf16.mxu0 0
    %1034 = vmatmul.mubr.bf16.gmra.mxu0 %v884
    %v1035 = vpop.f32.mrf.mxu0
    %v1036 = vadd.f32 %v935, %v1035
    %v1037 = vpop.f32.mrf.mxu0
    %v1038 = vpop.f32.mrf.mxu0
    %v1039 = vadd.f32 %v935, %v1038
    %v1040 = vpop.f32.mrf.mxu0
    %1041 = vmatprep.mubr.bf16.mxu0 0
    %1042 = vmatmul.mubr.bf16.gmra.mxu0 %v885
    %v1043 = vpop.f32.mrf.mxu0
    %v1044 = vadd.f32 %v935, %v1043
    %v1045 = vpop.f32.mrf.mxu0
    %v1046 = vpop.f32.mrf.mxu0
    %v1047 = vadd.f32 %v935, %v1046
    %v1048 = vpop.f32.mrf.mxu0
    %1049 = vmatprep.mubr.bf16.mxu0 0
    %1050 = vmatmul.mubr.bf16.gmra.mxu0 %v886
    %v1051 = vpop.f32.mrf.mxu0
    %v1052 = vadd.f32 %v935, %v1051
    %v1053 = vpop.f32.mrf.mxu0
    %v1054 = vpop.f32.mrf.mxu0
    %v1055 = vadd.f32 %v935, %v1054
    %v1056 = vpop.f32.mrf.mxu0
    %1057 = vmatprep.mubr.bf16.mxu0 0
    %1058 = vmatmul.mubr.bf16.gmra.mxu0 %v887
    %v1059 = vpop.f32.mrf.mxu0
    %v1060 = vadd.f32 %v935, %v1059
    %v1061 = vpop.f32.mrf.mxu0
    %v1062 = vpop.f32.mrf.mxu0
    %v1063 = vadd.f32 %v935, %v1062
    %v1064 = vpop.f32.mrf.mxu0
    %1065 = vmatprep.mubr.bf16.mxu0 0
    %1066 = vmatmul.mubr.bf16.gmra.mxu0 %v888
    %v1067 = vpop.f32.mrf.mxu0
    %v1068 = vadd.f32 %v935, %v1067
    %v1069 = vpop.f32.mrf.mxu0
    %v1070 = vpop.f32.mrf.mxu0
    %v1071 = vadd.f32 %v935, %v1070
    %v1072 = vpop.f32.mrf.mxu0
    %1073 = vmatprep.mubr.bf16.mxu0 0
    %1074 = vmatmul.mubr.bf16.gmra.mxu0 %v889
    %v1075 = vpop.f32.mrf.mxu0
    %v1076 = vadd.f32 %v935, %v1075
    %v1077 = vpop.f32.mrf.mxu0
    %v1078 = vpop.f32.mrf.mxu0
    %v1079 = vadd.f32 %v935, %v1078
    %v1080 = vpop.f32.mrf.mxu0
    %1081 = vmatprep.mubr.bf16.mxu0 0
    %1082 = vmatmul.mubr.bf16.gmra.mxu0 %v890
    %v1083 = vpop.f32.mrf.mxu0
    %v1084 = vadd.f32 %v935, %v1083
    %v1085 = vpop.f32.mrf.mxu0
    %v1086 = vpop.f32.mrf.mxu0
    %v1087 = vadd.f32 %v935, %v1086
    %v1088 = vpop.f32.mrf.mxu0
    %1089 = vmatprep.mubr.bf16.mxu0 0
    %1090 = vmatmul.mubr.bf16.gmra.mxu0 %v891
    %v1091 = vpop.f32.mrf.mxu0
    %v1092 = vadd.f32 %v935, %v1091
    %v1093 = vpop.f32.mrf.mxu0
    %v1094 = vpop.f32.mrf.mxu0
    %v1095 = vadd.f32 %v935, %v1094
    %v1096 = vpop.f32.mrf.mxu0
    %1097 = vmatprep.mubr.bf16.mxu0 0
    %1098 = vmatmul.mubr.bf16.gmra.mxu0 %v892
    %v1099 = vpop.f32.mrf.mxu0
    %v1100 = vadd.f32 %v935, %v1099
    %v1101 = vpop.f32.mrf.mxu0
    %v1102 = vpop.f32.mrf.mxu0
    %v1103 = vadd.f32 %v935, %v1102
    %v1104 = vpop.f32.mrf.mxu0
    %1105 = vmatprep.mubr.bf16.mxu0 0
    %1106 = vmatmul.mubr.bf16.gmra.mxu0 %v893
    %v1107 = vpop.f32.mrf.mxu0
    %v1108 = vadd.f32 %v935, %v1107
    %v1109 = vpop.f32.mrf.mxu0
    %v1110 = vpop.f32.mrf.mxu0
    %v1111 = vadd.f32 %v935, %v1110
    %v1112 = vpop.f32.mrf.mxu0
    %1113 = vmatprep.mubr.bf16.mxu0 0
    %1114 = vmatmul.mubr.bf16.gmra.mxu0 %v894
    %v1115 = vpop.f32.mrf.mxu0
    %v1116 = vadd.f32 %v935, %v1115
    %v1117 = vpop.f32.mrf.mxu0
    %v1118 = vpop.f32.mrf.mxu0
    %v1119 = vadd.f32 %v935, %v1118
    %v1120 = vpop.f32.mrf.mxu0
    %1121 = vmatprep.mubr.bf16.mxu0 0
    %1122 = vmatmul.mubr.bf16.gmra.mxu0 %v895
    %v1123 = vpop.f32.mrf.mxu0
    %v1124 = vadd.f32 %v935, %v1123
    %v1125 = vpop.f32.mrf.mxu0
    %v1126 = vpop.f32.mrf.mxu0
    %v1127 = vadd.f32 %v935, %v1126
    %v1128 = vpop.f32.mrf.mxu0
    %1129 = vmatprep.mubr.bf16.mxu0 0
    %1130 = vmatmul.mubr.bf16.gmra.mxu0 %v896
    %v1131 = vpop.f32.mrf.mxu0
    %v1132 = vadd.f32 %v935, %v1131
    %v1133 = vpop.f32.mrf.mxu0
    %v1134 = vpop.f32.mrf.mxu0
    %v1135 = vadd.f32 %v935, %v1134
    %v1136 = vpop.f32.mrf.mxu0
    %1137 = vmatprep.mubr.bf16.mxu0 0
    %1138 = vmatmul.mubr.bf16.gmra.mxu0 %v897
    %v1139 = vpop.f32.mrf.mxu0
    %v1140 = vadd.f32 %v935, %v1139
    %v1141 = vpop.f32.mrf.mxu0
    %v1142 = vpop.f32.mrf.mxu0
    %v1143 = vadd.f32 %v935, %v1142
    %v1144 = vpop.f32.mrf.mxu0
    %1145 = vmatprep.mubr.bf16.mxu0 0
    %1146 = vmatmul.mubr.bf16.gmra.mxu0 %v898
    %v1147 = vpop.f32.mrf.mxu0
    %v1148 = vadd.f32 %v935, %v1147
    %v1149 = vpop.f32.mrf.mxu0
    %v1150 = vpop.f32.mrf.mxu0
    %v1151 = vadd.f32 %v935, %v1150
    %v1152 = vpop.f32.mrf.mxu0
    %1153 = vmatprep.mubr.bf16.mxu0 0
    %1154 = vmatmul.mubr.bf16.gmra.mxu0 %v899
    %v1155 = vpop.f32.mrf.mxu0
    %v1156 = vadd.f32 %v935, %v1155
    %v1157 = vpop.f32.mrf.mxu0
    %v1158 = vpop.f32.mrf.mxu0
    %v1159 = vadd.f32 %v935, %v1158
    %v1160 = vpop.f32.mrf.mxu0
    %1161 = vmatprep.mubr.bf16.mxu0 0
    %1162 = vmatmul.mubr.bf16.gmra.mxu0 %v900
    %v1163 = vpop.f32.mrf.mxu0
    %v1164 = vadd.f32 %v935, %v1163
    %v1165 = vpop.f32.mrf.mxu0
    %v1166 = vpop.f32.mrf.mxu0
    %v1167 = vadd.f32 %v935, %v1166
    %v1168 = vpop.f32.mrf.mxu0
    %1169 = vmatprep.mubr.bf16.mxu0 0
    %1170 = vmatmul.mubr.bf16.gmra.mxu0 %v901
    %v1171 = vpop.f32.mrf.mxu0
    %v1172 = vadd.f32 %v935, %v1171
    %v1173 = vpop.f32.mrf.mxu0
    %v1174 = vpop.f32.mrf.mxu0
    %v1175 = vadd.f32 %v935, %v1174
    %v1176 = vpop.f32.mrf.mxu0
    %1177 = vmatprep.mubr.bf16.mxu0 0
    %1178 = vmatmul.mubr.bf16.gmra.mxu0 %v902
    %v1179 = vpop.f32.mrf.mxu0
    %v1180 = vadd.f32 %v935, %v1179
    %v1181 = vpop.f32.mrf.mxu0
    %v1182 = vpop.f32.mrf.mxu0
    %v1183 = vadd.f32 %v935, %v1182
    %v1184 = vpop.f32.mrf.mxu0
    %1185 = vmatprep.mubr.bf16.mxu0 0
    %1186 = vmatmul.mubr.bf16.gmra.mxu0 %v903
    %v1187 = vpop.f32.mrf.mxu0
    %v1188 = vadd.f32 %v935, %v1187
    %v1189 = vpop.f32.mrf.mxu0
    %v1190 = vpop.f32.mrf.mxu0
    %v1191 = vadd.f32 %v935, %v1190
    %v1192 = vpop.f32.mrf.mxu0
    %1193 = vmatprep.mubr.bf16.mxu0 0
    %1194 = vmatmul.mubr.bf16.gmra.mxu0 %v904
    %v1195 = vpop.f32.mrf.mxu0
    %v1196 = vadd.f32 %v935, %v1195
    %v1197 = vpop.f32.mrf.mxu0
    %v1198 = vpop.f32.mrf.mxu0
    %v1199 = vadd.f32 %v935, %v1198
    %v1200 = vpop.f32.mrf.mxu0
    %1201 = vmatprep.mubr.bf16.mxu0 0
    %1202 = vmatmul.mubr.bf16.gmra.mxu0 %v905
    %v1203 = vpop.f32.mrf.mxu0
    %v1204 = vadd.f32 %v935, %v1203
    %v1205 = vpop.f32.mrf.mxu0
    %v1206 = vpop.f32.mrf.mxu0
    %v1207 = vadd.f32 %v935, %v1206
    %v1208 = vpop.f32.mrf.mxu0
    %1209 = vmatprep.mubr.bf16.mxu0 0
    %1210 = vmatmul.mubr.bf16.gmra.mxu0 %v906
    %v1211 = vpop.f32.mrf.mxu0
    %v1212 = vadd.f32 %v935, %v1211
    %v1213 = vpop.f32.mrf.mxu0
    %v1214 = vpop.f32.mrf.mxu0
    %v1215 = vadd.f32 %v935, %v1214
    %v1216 = vpop.f32.mrf.mxu0
    %1217 = vmatprep.mubr.bf16.mxu0 0
    %1218 = vmatmul.mubr.bf16.gmra.mxu0 %v907
    %v1219 = vpop.f32.mrf.mxu0
    %v1220 = vadd.f32 %v935, %v1219
    %v1221 = vpop.f32.mrf.mxu0
    %v1222 = vpop.f32.mrf.mxu0
    %v1223 = vadd.f32 %v935, %v1222
    %v1224 = vpop.f32.mrf.mxu0
    %1225 = vmatprep.mubr.bf16.mxu0 0
    %1226 = vmatmul.mubr.bf16.gmra.mxu0 %v908
    %v1227 = vpop.f32.mrf.mxu0
    %v1228 = vadd.f32 %v935, %v1227
    %v1229 = vpop.f32.mrf.mxu0
    %v1230 = vpop.f32.mrf.mxu0
    %v1231 = vadd.f32 %v935, %v1230
    %v1232 = vpop.f32.mrf.mxu0
    %1233 = vmatprep.mubr.bf16.mxu0 0
    %1234 = vmatmul.mubr.bf16.gmra.mxu0 %v909
    %v1235 = vpop.f32.mrf.mxu0
    %v1236 = vadd.f32 %v935, %v1235
    %v1237 = vpop.f32.mrf.mxu0
    %v1238 = vpop.f32.mrf.mxu0
    %v1239 = vadd.f32 %v935, %v1238
    %v1240 = vpop.f32.mrf.mxu0
    %1241 = vmatprep.mubr.bf16.mxu0 0
    %1242 = vmatmul.mubr.bf16.gmra.mxu0 %v910
    %v1243 = vpop.f32.mrf.mxu0
    %v1244 = vadd.f32 %v935, %v1243
    %v1245 = vpop.f32.mrf.mxu0
    %v1246 = vpop.f32.mrf.mxu0
    %v1247 = vadd.f32 %v935, %v1246
    %v1248 = vpop.f32.mrf.mxu0
    %1249 = vmatprep.mubr.bf16.mxu0 0
    %1250 = vmatmul.mubr.bf16.gmra.mxu0 %v911
    %v1251 = vpop.f32.mrf.mxu0
    %v1252 = vadd.f32 %v935, %v1251
    %v1253 = vpop.f32.mrf.mxu0
    %v1254 = vpop.f32.mrf.mxu0
    %v1255 = vadd.f32 %v935, %v1254
    %v1256 = vpop.f32.mrf.mxu0
    %1257 = vmatprep.mubr.bf16.mxu0 0
    %1258 = vmatmul.mubr.bf16.gmra.mxu0 %v912
    %v1259 = vpop.f32.mrf.mxu0
    %v1260 = vadd.f32 %v935, %v1259
    %v1261 = vpop.f32.mrf.mxu0
    %v1262 = vpop.f32.mrf.mxu0
    %v1263 = vadd.f32 %v935, %v1262
    %v1264 = vpop.f32.mrf.mxu0
    %1265 = vmatprep.mubr.bf16.mxu0 0
    %1266 = vmatmul.mubr.bf16.gmra.mxu0 %v913
    %v1267 = vpop.f32.mrf.mxu0
    %v1268 = vadd.f32 %v935, %v1267
    %v1269 = vpop.f32.mrf.mxu0
    %v1270 = vpop.f32.mrf.mxu0
    %v1271 = vadd.f32 %v935, %v1270
    %v1272 = vpop.f32.mrf.mxu0
    %1273 = vdwg.mxu0
    %vm1274 = vcmp.gt.f32.partialorder %v1020, 0.0
    %vm1275 = vcmp.gt.f32.partialorder %v1023, 0.0
    %vm1276 = vcmp.gt.f32.partialorder %v1028, 0.0
    %vm1277 = vcmp.gt.f32.partialorder %v1031, 0.0
    %vm1278 = vcmp.gt.f32.partialorder %v1036, 0.0
    %vm1279 = vcmp.gt.f32.partialorder %v1039, 0.0
    %vm1280 = vcmp.gt.f32.partialorder %v1044, 0.0
    %vm1281 = vcmp.gt.f32.partialorder %v1047, 0.0
    %vm1282 = vcmp.gt.f32.partialorder %v1052, 0.0
    %vm1283 = vcmp.gt.f32.partialorder %v1055, 0.0
    %vm1284 = vcmp.gt.f32.partialorder %v1060, 0.0
    %vm1285 = vcmp.gt.f32.partialorder %v1063, 0.0
    %vm1286 = vcmp.gt.f32.partialorder %v1068, 0.0
    %vm1287 = vcmp.gt.f32.partialorder %v1071, 0.0
    %vm1288 = vcmp.gt.f32.partialorder %v1076, 0.0
    %vm1289 = vcmp.gt.f32.partialorder %v1079, 0.0
    %vm1290 = vcmp.gt.f32.partialorder %v1084, 0.0
    %vm1291 = vcmp.gt.f32.partialorder %v1087, 0.0
    %vm1292 = vcmp.gt.f32.partialorder %v1092, 0.0
    %vm1293 = vcmp.gt.f32.partialorder %v1095, 0.0
    %vm1294 = vcmp.gt.f32.partialorder %v1100, 0.0
    %vm1295 = vcmp.gt.f32.partialorder %v1103, 0.0
    %vm1296 = vcmp.gt.f32.partialorder %v1108, 0.0
    %vm1297 = vcmp.gt.f32.partialorder %v1111, 0.0
    %vm1298 = vcmp.gt.f32.partialorder %v1116, 0.0
    %vm1299 = vcmp.gt.f32.partialorder %v1119, 0.0
    %vm1300 = vcmp.gt.f32.partialorder %v1124, 0.0
    %vm1301 = vcmp.gt.f32.partialorder %v1127, 0.0
    %vm1302 = vcmp.gt.f32.partialorder %v1132, 0.0
    %vm1303 = vcmp.gt.f32.partialorder %v1135, 0.0
    %vm1304 = vcmp.gt.f32.partialorder %v1140, 0.0
    %vm1305 = vcmp.gt.f32.partialorder %v1143, 0.0
    %vm1306 = vcmp.gt.f32.partialorder %v1148, 0.0
    %vm1307 = vcmp.gt.f32.partialorder %v1151, 0.0
    %vm1308 = vcmp.gt.f32.partialorder %v1156, 0.0
    %vm1309 = vcmp.gt.f32.partialorder %v1159, 0.0
    %vm1310 = vcmp.gt.f32.partialorder %v1164, 0.0
    %vm1311 = vcmp.gt.f32.partialorder %v1167, 0.0
    %vm1312 = vcmp.gt.f32.partialorder %v1172, 0.0
    %vm1313 = vcmp.gt.f32.partialorder %v1175, 0.0
    %vm1314 = vcmp.gt.f32.partialorder %v1180, 0.0
    %vm1315 = vcmp.gt.f32.partialorder %v1183, 0.0
    %vm1316 = vcmp.gt.f32.partialorder %v1188, 0.0
    %vm1317 = vcmp.gt.f32.partialorder %v1191, 0.0
    %vm1318 = vcmp.gt.f32.partialorder %v1196, 0.0
    %vm1319 = vcmp.gt.f32.partialorder %v1199, 0.0
    %vm1320 = vcmp.gt.f32.partialorder %v1204, 0.0
    %vm1321 = vcmp.gt.f32.partialorder %v1207, 0.0
    %vm1322 = vcmp.gt.f32.partialorder %v1212, 0.0
    %vm1323 = vcmp.gt.f32.partialorder %v1215, 0.0
    %vm1324 = vcmp.gt.f32.partialorder %v1220, 0.0
    %vm1325 = vcmp.gt.f32.partialorder %v1223, 0.0
    %vm1326 = vcmp.gt.f32.partialorder %v1228, 0.0
    %vm1327 = vcmp.gt.f32.partialorder %v1231, 0.0
    %vm1328 = vcmp.gt.f32.partialorder %v1236, 0.0
    %vm1329 = vcmp.gt.f32.partialorder %v1239, 0.0
    %vm1330 = vcmp.gt.f32.partialorder %v1244, 0.0
    %vm1331 = vcmp.gt.f32.partialorder %v1247, 0.0
    %vm1332 = vcmp.gt.f32.partialorder %v1252, 0.0
    %vm1333 = vcmp.gt.f32.partialorder %v1255, 0.0
    %vm1334 = vcmp.gt.f32.partialorder %v1260, 0.0
    %vm1335 = vcmp.gt.f32.partialorder %v1263, 0.0
    %vm1336 = vcmp.gt.f32.partialorder %v1268, 0.0
    %vm1337 = vcmp.gt.f32.partialorder %v1271, 0.0
    %v1338 = vmul.f32 %v1020, 0.2
    %v1339 = vmul.f32 %v1023, 0.2
    %v1340 = vmul.f32 %v1028, 0.2
    %v1341 = vmul.f32 %v1031, 0.2
    %v1342 = vmul.f32 %v1036, 0.2
    %v1343 = vmul.f32 %v1039, 0.2
    %v1344 = vmul.f32 %v1044, 0.2
    %v1345 = vmul.f32 %v1047, 0.2
    %v1346 = vmul.f32 %v1052, 0.2
    %v1347 = vmul.f32 %v1055, 0.2
    %v1348 = vmul.f32 %v1060, 0.2
    %v1349 = vmul.f32 %v1063, 0.2
    %v1350 = vmul.f32 %v1068, 0.2
    %v1351 = vmul.f32 %v1071, 0.2
    %v1352 = vmul.f32 %v1076, 0.2
    %v1353 = vmul.f32 %v1079, 0.2
    %v1354 = vmul.f32 %v1084, 0.2
    %v1355 = vmul.f32 %v1087, 0.2
    %v1356 = vmul.f32 %v1092, 0.2
    %v1357 = vmul.f32 %v1095, 0.2
    %v1358 = vmul.f32 %v1100, 0.2
    %v1359 = vmul.f32 %v1103, 0.2
    %v1360 = vmul.f32 %v1108, 0.2
    %v1361 = vmul.f32 %v1111, 0.2
    %v1362 = vmul.f32 %v1116, 0.2
    %v1363 = vmul.f32 %v1119, 0.2
    %v1364 = vmul.f32 %v1124, 0.2
    %v1365 = vmul.f32 %v1127, 0.2
    %v1366 = vmul.f32 %v1132, 0.2
    %v1367 = vmul.f32 %v1135, 0.2
    %v1368 = vmul.f32 %v1140, 0.2
    %v1369 = vmul.f32 %v1143, 0.2
    %v1370 = vmul.f32 %v1148, 0.2
    %v1371 = vmul.f32 %v1151, 0.2
    %v1372 = vmul.f32 %v1156, 0.2
    %v1373 = vmul.f32 %v1159, 0.2
    %v1374 = vmul.f32 %v1164, 0.2
    %v1375 = vmul.f32 %v1167, 0.2
    %v1376 = vmul.f32 %v1172, 0.2
    %v1377 = vmul.f32 %v1175, 0.2
    %v1378 = vmul.f32 %v1180, 0.2
    %v1379 = vmul.f32 %v1183, 0.2
    %v1380 = vmul.f32 %v1188, 0.2
    %v1381 = vmul.f32 %v1191, 0.2
    %v1382 = vmul.f32 %v1196, 0.2
    %v1383 = vmul.f32 %v1199, 0.2
    %v1384 = vmul.f32 %v1204, 0.2
    %v1385 = vmul.f32 %v1207, 0.2
    %v1386 = vmul.f32 %v1212, 0.2
    %v1387 = vmul.f32 %v1215, 0.2
    %v1388 = vmul.f32 %v1220, 0.2
    %v1389 = vmul.f32 %v1223, 0.2
    %v1390 = vmul.f32 %v1228, 0.2
    %v1391 = vmul.f32 %v1231, 0.2
    %v1392 = vmul.f32 %v1236, 0.2
    %v1393 = vmul.f32 %v1239, 0.2
    %v1394 = vmul.f32 %v1244, 0.2
    %v1395 = vmul.f32 %v1247, 0.2
    %v1396 = vmul.f32 %v1252, 0.2
    %v1397 = vmul.f32 %v1255, 0.2
    %v1398 = vmul.f32 %v1260, 0.2
    %v1399 = vmul.f32 %v1263, 0.2
    %v1400 = vmul.f32 %v1268, 0.2
    %v1401 = vmul.f32 %v1271, 0.2
    %v1402 = vsel %vm1274, %v1020, %v1338
    %v1403 = vsel %vm1275, %v1023, %v1339
    %v1404 = vsel %vm1276, %v1028, %v1340
    %v1405 = vsel %vm1277, %v1031, %v1341
    %v1406 = vsel %vm1278, %v1036, %v1342
    %v1407 = vsel %vm1279, %v1039, %v1343
    %v1408 = vsel %vm1280, %v1044, %v1344
    %v1409 = vsel %vm1281, %v1047, %v1345
    %v1410 = vsel %vm1282, %v1052, %v1346
    %v1411 = vsel %vm1283, %v1055, %v1347
    %v1412 = vsel %vm1284, %v1060, %v1348
    %v1413 = vsel %vm1285, %v1063, %v1349
    %v1414 = vsel %vm1286, %v1068, %v1350
    %v1415 = vsel %vm1287, %v1071, %v1351
    %v1416 = vsel %vm1288, %v1076, %v1352
    %v1417 = vsel %vm1289, %v1079, %v1353
    %v1418 = vsel %vm1290, %v1084, %v1354
    %v1419 = vsel %vm1291, %v1087, %v1355
    %v1420 = vsel %vm1292, %v1092, %v1356
    %v1421 = vsel %vm1293, %v1095, %v1357
    %v1422 = vsel %vm1294, %v1100, %v1358
    %v1423 = vsel %vm1295, %v1103, %v1359
    %v1424 = vsel %vm1296, %v1108, %v1360
    %v1425 = vsel %vm1297, %v1111, %v1361
    %v1426 = vsel %vm1298, %v1116, %v1362
    %v1427 = vsel %vm1299, %v1119, %v1363
    %v1428 = vsel %vm1300, %v1124, %v1364
    %v1429 = vsel %vm1301, %v1127, %v1365
    %v1430 = vsel %vm1302, %v1132, %v1366
    %v1431 = vsel %vm1303, %v1135, %v1367
    %v1432 = vsel %vm1304, %v1140, %v1368
    %v1433 = vsel %vm1305, %v1143, %v1369
    %v1434 = vsel %vm1306, %v1148, %v1370
    %v1435 = vsel %vm1307, %v1151, %v1371
    %v1436 = vsel %vm1308, %v1156, %v1372
    %v1437 = vsel %vm1309, %v1159, %v1373
    %v1438 = vsel %vm1310, %v1164, %v1374
    %v1439 = vsel %vm1311, %v1167, %v1375
    %v1440 = vsel %vm1312, %v1172, %v1376
    %v1441 = vsel %vm1313, %v1175, %v1377
    %v1442 = vsel %vm1314, %v1180, %v1378
    %v1443 = vsel %vm1315, %v1183, %v1379
    %v1444 = vsel %vm1316, %v1188, %v1380
    %v1445 = vsel %vm1317, %v1191, %v1381
    %v1446 = vsel %vm1318, %v1196, %v1382
    %v1447 = vsel %vm1319, %v1199, %v1383
    %v1448 = vsel %vm1320, %v1204, %v1384
    %v1449 = vsel %vm1321, %v1207, %v1385
    %v1450 = vsel %vm1322, %v1212, %v1386
    %v1451 = vsel %vm1323, %v1215, %v1387
    %v1452 = vsel %vm1324, %v1220, %v1388
    %v1453 = vsel %vm1325, %v1223, %v1389
    %v1454 = vsel %vm1326, %v1228, %v1390
    %v1455 = vsel %vm1327, %v1231, %v1391
    %v1456 = vsel %vm1328, %v1236, %v1392
    %v1457 = vsel %vm1329, %v1239, %v1393
    %v1458 = vsel %vm1330, %v1244, %v1394
    %v1459 = vsel %vm1331, %v1247, %v1395
    %v1460 = vsel %vm1332, %v1252, %v1396
    %v1461 = vsel %vm1333, %v1255, %v1397
    %v1462 = vsel %vm1334, %v1260, %v1398
    %v1463 = vsel %vm1335, %v1263, %v1399
    %v1464 = vsel %vm1336, %v1268, %v1400
    %v1465 = vsel %vm1337, %v1271, %v1401
    %v1466 = vpack.c.bf16 %v1403, %v1402
    %v1467 = vpack.c.bf16 %v1405, %v1404
    %v1468 = vpack.c.bf16 %v1407, %v1406
    %v1469 = vpack.c.bf16 %v1409, %v1408
    %v1470 = vpack.c.bf16 %v1411, %v1410
    %v1471 = vpack.c.bf16 %v1413, %v1412
    %v1472 = vpack.c.bf16 %v1415, %v1414
    %v1473 = vpack.c.bf16 %v1417, %v1416
    %v1474 = vpack.c.bf16 %v1419, %v1418
    %v1475 = vpack.c.bf16 %v1421, %v1420
    %v1476 = vpack.c.bf16 %v1423, %v1422
    %v1477 = vpack.c.bf16 %v1425, %v1424
    %v1478 = vpack.c.bf16 %v1427, %v1426
    %v1479 = vpack.c.bf16 %v1429, %v1428
    %v1480 = vpack.c.bf16 %v1431, %v1430
    %v1481 = vpack.c.bf16 %v1433, %v1432
    %v1482 = vpack.c.bf16 %v1435, %v1434
    %v1483 = vpack.c.bf16 %v1437, %v1436
    %v1484 = vpack.c.bf16 %v1439, %v1438
    %v1485 = vpack.c.bf16 %v1441, %v1440
    %v1486 = vpack.c.bf16 %v1443, %v1442
    %v1487 = vpack.c.bf16 %v1445, %v1444
    %v1488 = vpack.c.bf16 %v1447, %v1446
    %v1489 = vpack.c.bf16 %v1449, %v1448
    %v1490 = vpack.c.bf16 %v1451, %v1450
    %v1491 = vpack.c.bf16 %v1453, %v1452
    %v1492 = vpack.c.bf16 %v1455, %v1454
    %v1493 = vpack.c.bf16 %v1457, %v1456
    %v1494 = vpack.c.bf16 %v1459, %v1458
    %v1495 = vpack.c.bf16 %v1461, %v1460
    %v1496 = vpack.c.bf16 %v1463, %v1462
    %v1497 = vpack.c.bf16 %v1465, %v1464
    %v1498 = vld [vmem:[%s5] sm:$0xf]
    %v1499 = vld [vmem:[%s5 + $0x4] sm:$0xf]
    %v1500 = vld [vmem:[%s5 + $0x8] sm:$0xf]
    %v1501 = vld [vmem:[%s5 + $0xc] sm:$0xf]
    %v1502 = vld [vmem:[%s5 + $0x10] sm:$0xf]
    %v1503 = vld [vmem:[%s5 + $0x14] sm:$0xf]
    %v1504 = vld [vmem:[%s5 + $0x18] sm:$0xf]
    %v1505 = vld [vmem:[%s5 + $0x1c] sm:$0xf]
    %v1506 = vld [vmem:[%s6] sm:$0x1]
    %v1508 = vlaneseq
    %v1509 = vshrl.u32 %v1508, 7
    %v1510 = vsub.s32 0, %v1509
    %v1511 = vrot.slane %v1506, %v1510
    %v1521 = vunpack.c.l.b16 %v1498
    %v1522 = vunpack.c.l.b16 %v1499
    %v1523 = vunpack.c.l.b16 %v1500
    %v1524 = vunpack.c.l.b16 %v1501
    %v1525 = vunpack.c.l.b16 %v1502
    %v1526 = vunpack.c.l.b16 %v1503
    %v1527 = vunpack.c.l.b16 %v1504
    %v1528 = vunpack.c.l.b16 %v1505
    %v1529 = vpack.c.b16 %v1522, %v1521
    %v1530 = vpack.c.b16 %v1524, %v1523
    %v1531 = vpack.c.b16 %v1526, %v1525
    %v1532 = vpack.c.b16 %v1528, %v1527
    %v1538 = vsel %vm112, %v1466, 0
    %v1541 = vsel %vm112, %v1467, 0
    %v1544 = vsel %vm112, %v1468, 0
    %v1547 = vsel %vm112, %v1469, 0
    %v1550 = vsel %vm112, %v1470, 0
    %v1553 = vsel %vm112, %v1471, 0
    %v1556 = vsel %vm112, %v1472, 0
    %v1559 = vsel %vm112, %v1473, 0
    %v1562 = vsel %vm112, %v1474, 0
    %v1565 = vsel %vm112, %v1475, 0
    %v1568 = vsel %vm112, %v1476, 0
    %v1571 = vsel %vm112, %v1477, 0
    %v1574 = vsel %vm112, %v1478, 0
    %v1577 = vsel %vm112, %v1479, 0
    %v1580 = vsel %vm112, %v1480, 0
    %v1583 = vsel %vm112, %v1481, 0
    %v1586 = vsel %vm112, %v1482, 0
    %v1589 = vsel %vm112, %v1483, 0
    %v1592 = vsel %vm112, %v1484, 0
    %v1595 = vsel %vm112, %v1485, 0
    %v1598 = vsel %vm112, %v1486, 0
    %v1601 = vsel %vm112, %v1487, 0
    %v1604 = vsel %vm112, %v1488, 0
    %v1607 = vsel %vm112, %v1489, 0
    %v1610 = vsel %vm112, %v1490, 0
    %v1613 = vsel %vm112, %v1491, 0
    %v1616 = vsel %vm112, %v1492, 0
    %v1619 = vsel %vm112, %v1493, 0
    %v1622 = vsel %vm112, %v1494, 0
    %v1625 = vsel %vm112, %v1495, 0
    %v1628 = vsel %vm112, %v1496, 0
    %v1631 = vsel %vm112, %v1497, 0
    %1633 = vmatprep.subr.bf16.mxu0 0
    %1634 = vmatpush1.bf16.msra.mxu0 0
    %1635 = vmatprep.subr.bf16.mxu0 0
    %1636 = vmatpush1.bf16.msra.mxu0 0
    %1637 = vmatprep.subr.bf16.mxu0 0
    %1638 = vmatpush1.bf16.msra.mxu0 0
    %1639 = vmatprep.subr.bf16.mxu0 0
    %1640 = vmatpush1.bf16.msra.mxu0 0
    %1641 = vmatprep.subr.bf16.mxu0 0
    %1642 = vmatpush1.bf16.msra.mxu0 %v1532
    %1643 = vmatprep.subr.bf16.mxu0 0
    %1644 = vmatpush1.bf16.msra.mxu0 %v1531
    %1645 = vmatprep.subr.bf16.mxu0 0
    %1646 = vmatpush1.bf16.msra.mxu0 %v1530
    %1647 = vmatprep.subr.bf16.mxu0 0
    %1648 = vmatpush1.bf16.msra.mxu0 %v1529
    %1649 = vmatprep.subr.bf16.mxu0 0
    %1650 = vmatpush2.bf16.msra.mxu0 0
    %1651 = vmatprep.subr.bf16.mxu0 0
    %1652 = vmatpush2.bf16.msra.mxu0 0
    %1653 = vmatprep.subr.bf16.mxu0 0
    %1654 = vmatpush2.bf16.msra.mxu0 0
    %1655 = vmatprep.subr.bf16.mxu0 0
    %1656 = vmatpush2.bf16.msra.mxu0 0
    %1657 = vmatprep.subr.bf16.mxu0 0
    %1658 = vmatpush2.bf16.msra.mxu0 0
    %1659 = vmatprep.subr.bf16.mxu0 0
    %1660 = vmatpush2.bf16.msra.mxu0 0
    %1661 = vmatprep.subr.bf16.mxu0 0
    %1662 = vmatpush2.bf16.msra.mxu0 0
    %1663 = vmatprep.subr.bf16.mxu0 0
    %1664 = vmatpush2.bf16.msra.mxu0 0
    %1665 = vmatprep.mubr.bf16.mxu0 0
    %1666 = vmatmul.mubr.bf16.gmra.mxu0 %v1538
    %v1667 = vpop.f32.mrf.mxu0
    %v1668 = vadd.f32 %v1511, %v1667
    %v1669 = vpop.f32.mrf.mxu0
    %v1670 = vpop.f32.mrf.mxu0
    %v1671 = vadd.f32 %v1511, %v1670
    %v1672 = vpop.f32.mrf.mxu0
    %1673 = vmatprep.mubr.bf16.mxu0 0
    %1674 = vmatmul.mubr.bf16.gmra.mxu0 %v1541
    %v1675 = vpop.f32.mrf.mxu0
    %v1676 = vadd.f32 %v1511, %v1675
    %v1677 = vpop.f32.mrf.mxu0
    %v1678 = vpop.f32.mrf.mxu0
    %v1679 = vadd.f32 %v1511, %v1678
    %v1680 = vpop.f32.mrf.mxu0
    %1681 = vmatprep.mubr.bf16.mxu0 0
    %1682 = vmatmul.mubr.bf16.gmra.mxu0 %v1544
    %v1683 = vpop.f32.mrf.mxu0
    %v1684 = vadd.f32 %v1511, %v1683
    %v1685 = vpop.f32.mrf.mxu0
    %v1686 = vpop.f32.mrf.mxu0
    %v1687 = vadd.f32 %v1511, %v1686
    %v1688 = vpop.f32.mrf.mxu0
    %1689 = vmatprep.mubr.bf16.mxu0 0
    %1690 = vmatmul.mubr.bf16.gmra.mxu0 %v1547
    %v1691 = vpop.f32.mrf.mxu0
    %v1692 = vadd.f32 %v1511, %v1691
    %v1693 = vpop.f32.mrf.mxu0
    %v1694 = vpop.f32.mrf.mxu0
    %v1695 = vadd.f32 %v1511, %v1694
    %v1696 = vpop.f32.mrf.mxu0
    %1697 = vmatprep.mubr.bf16.mxu0 0
    %1698 = vmatmul.mubr.bf16.gmra.mxu0 %v1550
    %v1699 = vpop.f32.mrf.mxu0
    %v1700 = vadd.f32 %v1511, %v1699
    %v1701 = vpop.f32.mrf.mxu0
    %v1702 = vpop.f32.mrf.mxu0
    %v1703 = vadd.f32 %v1511, %v1702
    %v1704 = vpop.f32.mrf.mxu0
    %1705 = vmatprep.mubr.bf16.mxu0 0
    %1706 = vmatmul.mubr.bf16.gmra.mxu0 %v1553
    %v1707 = vpop.f32.mrf.mxu0
    %v1708 = vadd.f32 %v1511, %v1707
    %v1709 = vpop.f32.mrf.mxu0
    %v1710 = vpop.f32.mrf.mxu0
    %v1711 = vadd.f32 %v1511, %v1710
    %v1712 = vpop.f32.mrf.mxu0
    %1713 = vmatprep.mubr.bf16.mxu0 0
    %1714 = vmatmul.mubr.bf16.gmra.mxu0 %v1556
    %v1715 = vpop.f32.mrf.mxu0
    %v1716 = vadd.f32 %v1511, %v1715
    %v1717 = vpop.f32.mrf.mxu0
    %v1718 = vpop.f32.mrf.mxu0
    %v1719 = vadd.f32 %v1511, %v1718
    %v1720 = vpop.f32.mrf.mxu0
    %1721 = vmatprep.mubr.bf16.mxu0 0
    %1722 = vmatmul.mubr.bf16.gmra.mxu0 %v1559
    %v1723 = vpop.f32.mrf.mxu0
    %v1724 = vadd.f32 %v1511, %v1723
    %v1725 = vpop.f32.mrf.mxu0
    %v1726 = vpop.f32.mrf.mxu0
    %v1727 = vadd.f32 %v1511, %v1726
    %v1728 = vpop.f32.mrf.mxu0
    %1729 = vmatprep.mubr.bf16.mxu0 0
    %1730 = vmatmul.mubr.bf16.gmra.mxu0 %v1562
    %v1731 = vpop.f32.mrf.mxu0
    %v1732 = vadd.f32 %v1511, %v1731
    %v1733 = vpop.f32.mrf.mxu0
    %v1734 = vpop.f32.mrf.mxu0
    %v1735 = vadd.f32 %v1511, %v1734
    %v1736 = vpop.f32.mrf.mxu0
    %1737 = vmatprep.mubr.bf16.mxu0 0
    %1738 = vmatmul.mubr.bf16.gmra.mxu0 %v1565
    %v1739 = vpop.f32.mrf.mxu0
    %v1740 = vadd.f32 %v1511, %v1739
    %v1741 = vpop.f32.mrf.mxu0
    %v1742 = vpop.f32.mrf.mxu0
    %v1743 = vadd.f32 %v1511, %v1742
    %v1744 = vpop.f32.mrf.mxu0
    %1745 = vmatprep.mubr.bf16.mxu0 0
    %1746 = vmatmul.mubr.bf16.gmra.mxu0 %v1568
    %v1747 = vpop.f32.mrf.mxu0
    %v1748 = vadd.f32 %v1511, %v1747
    %v1749 = vpop.f32.mrf.mxu0
    %v1750 = vpop.f32.mrf.mxu0
    %v1751 = vadd.f32 %v1511, %v1750
    %v1752 = vpop.f32.mrf.mxu0
    %1753 = vmatprep.mubr.bf16.mxu0 0
    %1754 = vmatmul.mubr.bf16.gmra.mxu0 %v1571
    %v1755 = vpop.f32.mrf.mxu0
    %v1756 = vadd.f32 %v1511, %v1755
    %v1757 = vpop.f32.mrf.mxu0
    %v1758 = vpop.f32.mrf.mxu0
    %v1759 = vadd.f32 %v1511, %v1758
    %v1760 = vpop.f32.mrf.mxu0
    %1761 = vmatprep.mubr.bf16.mxu0 0
    %1762 = vmatmul.mubr.bf16.gmra.mxu0 %v1574
    %v1763 = vpop.f32.mrf.mxu0
    %v1764 = vadd.f32 %v1511, %v1763
    %v1765 = vpop.f32.mrf.mxu0
    %v1766 = vpop.f32.mrf.mxu0
    %v1767 = vadd.f32 %v1511, %v1766
    %v1768 = vpop.f32.mrf.mxu0
    %1769 = vmatprep.mubr.bf16.mxu0 0
    %1770 = vmatmul.mubr.bf16.gmra.mxu0 %v1577
    %v1771 = vpop.f32.mrf.mxu0
    %v1772 = vadd.f32 %v1511, %v1771
    %v1773 = vpop.f32.mrf.mxu0
    %v1774 = vpop.f32.mrf.mxu0
    %v1775 = vadd.f32 %v1511, %v1774
    %v1776 = vpop.f32.mrf.mxu0
    %1777 = vmatprep.mubr.bf16.mxu0 0
    %1778 = vmatmul.mubr.bf16.gmra.mxu0 %v1580
    %v1779 = vpop.f32.mrf.mxu0
    %v1780 = vadd.f32 %v1511, %v1779
    %v1781 = vpop.f32.mrf.mxu0
    %v1782 = vpop.f32.mrf.mxu0
    %v1783 = vadd.f32 %v1511, %v1782
    %v1784 = vpop.f32.mrf.mxu0
    %1785 = vmatprep.mubr.bf16.mxu0 0
    %1786 = vmatmul.mubr.bf16.gmra.mxu0 %v1583
    %v1787 = vpop.f32.mrf.mxu0
    %v1788 = vadd.f32 %v1511, %v1787
    %v1789 = vpop.f32.mrf.mxu0
    %v1790 = vpop.f32.mrf.mxu0
    %v1791 = vadd.f32 %v1511, %v1790
    %v1792 = vpop.f32.mrf.mxu0
    %1793 = vmatprep.mubr.bf16.mxu0 0
    %1794 = vmatmul.mubr.bf16.gmra.mxu0 %v1586
    %v1795 = vpop.f32.mrf.mxu0
    %v1796 = vadd.f32 %v1511, %v1795
    %v1797 = vpop.f32.mrf.mxu0
    %v1798 = vpop.f32.mrf.mxu0
    %v1799 = vadd.f32 %v1511, %v1798
    %v1800 = vpop.f32.mrf.mxu0
    %1801 = vmatprep.mubr.bf16.mxu0 0
    %1802 = vmatmul.mubr.bf16.gmra.mxu0 %v1589
    %v1803 = vpop.f32.mrf.mxu0
    %v1804 = vadd.f32 %v1511, %v1803
    %v1805 = vpop.f32.mrf.mxu0
    %v1806 = vpop.f32.mrf.mxu0
    %v1807 = vadd.f32 %v1511, %v1806
    %v1808 = vpop.f32.mrf.mxu0
    %1809 = vmatprep.mubr.bf16.mxu0 0
    %1810 = vmatmul.mubr.bf16.gmra.mxu0 %v1592
    %v1811 = vpop.f32.mrf.mxu0
    %v1812 = vadd.f32 %v1511, %v1811
    %v1813 = vpop.f32.mrf.mxu0
    %v1814 = vpop.f32.mrf.mxu0
    %v1815 = vadd.f32 %v1511, %v1814
    %v1816 = vpop.f32.mrf.mxu0
    %1817 = vmatprep.mubr.bf16.mxu0 0
    %1818 = vmatmul.mubr.bf16.gmra.mxu0 %v1595
    %v1819 = vpop.f32.mrf.mxu0
    %v1820 = vadd.f32 %v1511, %v1819
    %v1821 = vpop.f32.mrf.mxu0
    %v1822 = vpop.f32.mrf.mxu0
    %v1823 = vadd.f32 %v1511, %v1822
    %v1824 = vpop.f32.mrf.mxu0
    %1825 = vmatprep.mubr.bf16.mxu0 0
    %1826 = vmatmul.mubr.bf16.gmra.mxu0 %v1598
    %v1827 = vpop.f32.mrf.mxu0
    %v1828 = vadd.f32 %v1511, %v1827
    %v1829 = vpop.f32.mrf.mxu0
    %v1830 = vpop.f32.mrf.mxu0
    %v1831 = vadd.f32 %v1511, %v1830
    %v1832 = vpop.f32.mrf.mxu0
    %1833 = vmatprep.mubr.bf16.mxu0 0
    %1834 = vmatmul.mubr.bf16.gmra.mxu0 %v1601
    %v1835 = vpop.f32.mrf.mxu0
    %v1836 = vadd.f32 %v1511, %v1835
    %v1837 = vpop.f32.mrf.mxu0
    %v1838 = vpop.f32.mrf.mxu0
    %v1839 = vadd.f32 %v1511, %v1838
    %v1840 = vpop.f32.mrf.mxu0
    %1841 = vmatprep.mubr.bf16.mxu0 0
    %1842 = vmatmul.mubr.bf16.gmra.mxu0 %v1604
    %v1843 = vpop.f32.mrf.mxu0
    %v1844 = vadd.f32 %v1511, %v1843
    %v1845 = vpop.f32.mrf.mxu0
    %v1846 = vpop.f32.mrf.mxu0
    %v1847 = vadd.f32 %v1511, %v1846
    %v1848 = vpop.f32.mrf.mxu0
    %1849 = vmatprep.mubr.bf16.mxu0 0
    %1850 = vmatmul.mubr.bf16.gmra.mxu0 %v1607
    %v1851 = vpop.f32.mrf.mxu0
    %v1852 = vadd.f32 %v1511, %v1851
    %v1853 = vpop.f32.mrf.mxu0
    %v1854 = vpop.f32.mrf.mxu0
    %v1855 = vadd.f32 %v1511, %v1854
    %v1856 = vpop.f32.mrf.mxu0
    %1857 = vmatprep.mubr.bf16.mxu0 0
    %1858 = vmatmul.mubr.bf16.gmra.mxu0 %v1610
    %v1859 = vpop.f32.mrf.mxu0
    %v1860 = vadd.f32 %v1511, %v1859
    %v1861 = vpop.f32.mrf.mxu0
    %v1862 = vpop.f32.mrf.mxu0
    %v1863 = vadd.f32 %v1511, %v1862
    %v1864 = vpop.f32.mrf.mxu0
    %1865 = vmatprep.mubr.bf16.mxu0 0
    %1866 = vmatmul.mubr.bf16.gmra.mxu0 %v1613
    %v1867 = vpop.f32.mrf.mxu0
    %v1868 = vadd.f32 %v1511, %v1867
    %v1869 = vpop.f32.mrf.mxu0
    %v1870 = vpop.f32.mrf.mxu0
    %v1871 = vadd.f32 %v1511, %v1870
    %v1872 = vpop.f32.mrf.mxu0
    %1873 = vmatprep.mubr.bf16.mxu0 0
    %1874 = vmatmul.mubr.bf16.gmra.mxu0 %v1616
    %v1875 = vpop.f32.mrf.mxu0
    %v1876 = vadd.f32 %v1511, %v1875
    %v1877 = vpop.f32.mrf.mxu0
    %v1878 = vpop.f32.mrf.mxu0
    %v1879 = vadd.f32 %v1511, %v1878
    %v1880 = vpop.f32.mrf.mxu0
    %1881 = vmatprep.mubr.bf16.mxu0 0
    %1882 = vmatmul.mubr.bf16.gmra.mxu0 %v1619
    %v1883 = vpop.f32.mrf.mxu0
    %v1884 = vadd.f32 %v1511, %v1883
    %v1885 = vpop.f32.mrf.mxu0
    %v1886 = vpop.f32.mrf.mxu0
    %v1887 = vadd.f32 %v1511, %v1886
    %v1888 = vpop.f32.mrf.mxu0
    %1889 = vmatprep.mubr.bf16.mxu0 0
    %1890 = vmatmul.mubr.bf16.gmra.mxu0 %v1622
    %v1891 = vpop.f32.mrf.mxu0
    %v1892 = vadd.f32 %v1511, %v1891
    %v1893 = vpop.f32.mrf.mxu0
    %v1894 = vpop.f32.mrf.mxu0
    %v1895 = vadd.f32 %v1511, %v1894
    %v1896 = vpop.f32.mrf.mxu0
    %1897 = vmatprep.mubr.bf16.mxu0 0
    %1898 = vmatmul.mubr.bf16.gmra.mxu0 %v1625
    %v1899 = vpop.f32.mrf.mxu0
    %v1900 = vadd.f32 %v1511, %v1899
    %v1901 = vpop.f32.mrf.mxu0
    %v1902 = vpop.f32.mrf.mxu0
    %v1903 = vadd.f32 %v1511, %v1902
    %v1904 = vpop.f32.mrf.mxu0
    %1905 = vmatprep.mubr.bf16.mxu0 0
    %1906 = vmatmul.mubr.bf16.gmra.mxu0 %v1628
    %v1907 = vpop.f32.mrf.mxu0
    %v1908 = vadd.f32 %v1511, %v1907
    %v1909 = vpop.f32.mrf.mxu0
    %v1910 = vpop.f32.mrf.mxu0
    %v1911 = vadd.f32 %v1511, %v1910
    %v1912 = vpop.f32.mrf.mxu0
    %1913 = vmatprep.mubr.bf16.mxu0 0
    %1914 = vmatmul.mubr.bf16.gmra.mxu0 %v1631
    %v1915 = vpop.f32.mrf.mxu0
    %v1916 = vadd.f32 %v1511, %v1915
    %v1917 = vpop.f32.mrf.mxu0
    %v1918 = vpop.f32.mrf.mxu0
    %v1919 = vadd.f32 %v1511, %v1918
    %v1920 = vpop.f32.mrf.mxu0
    %1921 = vdwg.mxu0
    %vm1922 = vcmp.gt.f32.partialorder %v1668, 0.0
    %vm1923 = vcmp.gt.f32.partialorder %v1671, 0.0
    %vm1924 = vcmp.gt.f32.partialorder %v1676, 0.0
    %vm1925 = vcmp.gt.f32.partialorder %v1679, 0.0
    %vm1926 = vcmp.gt.f32.partialorder %v1684, 0.0
    %vm1927 = vcmp.gt.f32.partialorder %v1687, 0.0
    %vm1928 = vcmp.gt.f32.partialorder %v1692, 0.0
    %vm1929 = vcmp.gt.f32.partialorder %v1695, 0.0
    %vm1930 = vcmp.gt.f32.partialorder %v1700, 0.0
    %vm1931 = vcmp.gt.f32.partialorder %v1703, 0.0
    %vm1932 = vcmp.gt.f32.partialorder %v1708, 0.0
    %vm1933 = vcmp.gt.f32.partialorder %v1711, 0.0
    %vm1934 = vcmp.gt.f32.partialorder %v1716, 0.0
    %vm1935 = vcmp.gt.f32.partialorder %v1719, 0.0
    %vm1936 = vcmp.gt.f32.partialorder %v1724, 0.0
    %vm1937 = vcmp.gt.f32.partialorder %v1727, 0.0
    %vm1938 = vcmp.gt.f32.partialorder %v1732, 0.0
    %vm1939 = vcmp.gt.f32.partialorder %v1735, 0.0
    %vm1940 = vcmp.gt.f32.partialorder %v1740, 0.0
    %vm1941 = vcmp.gt.f32.partialorder %v1743, 0.0
    %vm1942 = vcmp.gt.f32.partialorder %v1748, 0.0
    %vm1943 = vcmp.gt.f32.partialorder %v1751, 0.0
    %vm1944 = vcmp.gt.f32.partialorder %v1756, 0.0
    %vm1945 = vcmp.gt.f32.partialorder %v1759, 0.0
    %vm1946 = vcmp.gt.f32.partialorder %v1764, 0.0
    %vm1947 = vcmp.gt.f32.partialorder %v1767, 0.0
    %vm1948 = vcmp.gt.f32.partialorder %v1772, 0.0
    %vm1949 = vcmp.gt.f32.partialorder %v1775, 0.0
    %vm1950 = vcmp.gt.f32.partialorder %v1780, 0.0
    %vm1951 = vcmp.gt.f32.partialorder %v1783, 0.0
    %vm1952 = vcmp.gt.f32.partialorder %v1788, 0.0
    %vm1953 = vcmp.gt.f32.partialorder %v1791, 0.0
    %vm1954 = vcmp.gt.f32.partialorder %v1796, 0.0
    %vm1955 = vcmp.gt.f32.partialorder %v1799, 0.0
    %vm1956 = vcmp.gt.f32.partialorder %v1804, 0.0
    %vm1957 = vcmp.gt.f32.partialorder %v1807, 0.0
    %vm1958 = vcmp.gt.f32.partialorder %v1812, 0.0
    %vm1959 = vcmp.gt.f32.partialorder %v1815, 0.0
    %vm1960 = vcmp.gt.f32.partialorder %v1820, 0.0
    %vm1961 = vcmp.gt.f32.partialorder %v1823, 0.0
    %vm1962 = vcmp.gt.f32.partialorder %v1828, 0.0
    %vm1963 = vcmp.gt.f32.partialorder %v1831, 0.0
    %vm1964 = vcmp.gt.f32.partialorder %v1836, 0.0
    %vm1965 = vcmp.gt.f32.partialorder %v1839, 0.0
    %vm1966 = vcmp.gt.f32.partialorder %v1844, 0.0
    %vm1967 = vcmp.gt.f32.partialorder %v1847, 0.0
    %vm1968 = vcmp.gt.f32.partialorder %v1852, 0.0
    %vm1969 = vcmp.gt.f32.partialorder %v1855, 0.0
    %vm1970 = vcmp.gt.f32.partialorder %v1860, 0.0
    %vm1971 = vcmp.gt.f32.partialorder %v1863, 0.0
    %vm1972 = vcmp.gt.f32.partialorder %v1868, 0.0
    %vm1973 = vcmp.gt.f32.partialorder %v1871, 0.0
    %vm1974 = vcmp.gt.f32.partialorder %v1876, 0.0
    %vm1975 = vcmp.gt.f32.partialorder %v1879, 0.0
    %vm1976 = vcmp.gt.f32.partialorder %v1884, 0.0
    %vm1977 = vcmp.gt.f32.partialorder %v1887, 0.0
    %vm1978 = vcmp.gt.f32.partialorder %v1892, 0.0
    %vm1979 = vcmp.gt.f32.partialorder %v1895, 0.0
    %vm1980 = vcmp.gt.f32.partialorder %v1900, 0.0
    %vm1981 = vcmp.gt.f32.partialorder %v1903, 0.0
    %vm1982 = vcmp.gt.f32.partialorder %v1908, 0.0
    %vm1983 = vcmp.gt.f32.partialorder %v1911, 0.0
    %vm1984 = vcmp.gt.f32.partialorder %v1916, 0.0
    %vm1985 = vcmp.gt.f32.partialorder %v1919, 0.0
    %v1986 = vmul.f32 %v1668, 0.2
    %v1987 = vmul.f32 %v1671, 0.2
    %v1988 = vmul.f32 %v1676, 0.2
    %v1989 = vmul.f32 %v1679, 0.2
    %v1990 = vmul.f32 %v1684, 0.2
    %v1991 = vmul.f32 %v1687, 0.2
    %v1992 = vmul.f32 %v1692, 0.2
    %v1993 = vmul.f32 %v1695, 0.2
    %v1994 = vmul.f32 %v1700, 0.2
    %v1995 = vmul.f32 %v1703, 0.2
    %v1996 = vmul.f32 %v1708, 0.2
    %v1997 = vmul.f32 %v1711, 0.2
    %v1998 = vmul.f32 %v1716, 0.2
    %v1999 = vmul.f32 %v1719, 0.2
    %v2000 = vmul.f32 %v1724, 0.2
    %v2001 = vmul.f32 %v1727, 0.2
    %v2002 = vmul.f32 %v1732, 0.2
    %v2003 = vmul.f32 %v1735, 0.2
    %v2004 = vmul.f32 %v1740, 0.2
    %v2005 = vmul.f32 %v1743, 0.2
    %v2006 = vmul.f32 %v1748, 0.2
    %v2007 = vmul.f32 %v1751, 0.2
    %v2008 = vmul.f32 %v1756, 0.2
    %v2009 = vmul.f32 %v1759, 0.2
    %v2010 = vmul.f32 %v1764, 0.2
    %v2011 = vmul.f32 %v1767, 0.2
    %v2012 = vmul.f32 %v1772, 0.2
    %v2013 = vmul.f32 %v1775, 0.2
    %v2014 = vmul.f32 %v1780, 0.2
    %v2015 = vmul.f32 %v1783, 0.2
    %v2016 = vmul.f32 %v1788, 0.2
    %v2017 = vmul.f32 %v1791, 0.2
    %v2018 = vmul.f32 %v1796, 0.2
    %v2019 = vmul.f32 %v1799, 0.2
    %v2020 = vmul.f32 %v1804, 0.2
    %v2021 = vmul.f32 %v1807, 0.2
    %v2022 = vmul.f32 %v1812, 0.2
    %v2023 = vmul.f32 %v1815, 0.2
    %v2024 = vmul.f32 %v1820, 0.2
    %v2025 = vmul.f32 %v1823, 0.2
    %v2026 = vmul.f32 %v1828, 0.2
    %v2027 = vmul.f32 %v1831, 0.2
    %v2028 = vmul.f32 %v1836, 0.2
    %v2029 = vmul.f32 %v1839, 0.2
    %v2030 = vmul.f32 %v1844, 0.2
    %v2031 = vmul.f32 %v1847, 0.2
    %v2032 = vmul.f32 %v1852, 0.2
    %v2033 = vmul.f32 %v1855, 0.2
    %v2034 = vmul.f32 %v1860, 0.2
    %v2035 = vmul.f32 %v1863, 0.2
    %v2036 = vmul.f32 %v1868, 0.2
    %v2037 = vmul.f32 %v1871, 0.2
    %v2038 = vmul.f32 %v1876, 0.2
    %v2039 = vmul.f32 %v1879, 0.2
    %v2040 = vmul.f32 %v1884, 0.2
    %v2041 = vmul.f32 %v1887, 0.2
    %v2042 = vmul.f32 %v1892, 0.2
    %v2043 = vmul.f32 %v1895, 0.2
    %v2044 = vmul.f32 %v1900, 0.2
    %v2045 = vmul.f32 %v1903, 0.2
    %v2046 = vmul.f32 %v1908, 0.2
    %v2047 = vmul.f32 %v1911, 0.2
    %v2048 = vmul.f32 %v1916, 0.2
    %v2049 = vmul.f32 %v1919, 0.2
    %v2050 = vsel %vm1922, %v1668, %v1986
    %v2051 = vsel %vm1923, %v1671, %v1987
    %v2052 = vsel %vm1924, %v1676, %v1988
    %v2053 = vsel %vm1925, %v1679, %v1989
    %v2054 = vsel %vm1926, %v1684, %v1990
    %v2055 = vsel %vm1927, %v1687, %v1991
    %v2056 = vsel %vm1928, %v1692, %v1992
    %v2057 = vsel %vm1929, %v1695, %v1993
    %v2058 = vsel %vm1930, %v1700, %v1994
    %v2059 = vsel %vm1931, %v1703, %v1995
    %v2060 = vsel %vm1932, %v1708, %v1996
    %v2061 = vsel %vm1933, %v1711, %v1997
    %v2062 = vsel %vm1934, %v1716, %v1998
    %v2063 = vsel %vm1935, %v1719, %v1999
    %v2064 = vsel %vm1936, %v1724, %v2000
    %v2065 = vsel %vm1937, %v1727, %v2001
    %v2066 = vsel %vm1938, %v1732, %v2002
    %v2067 = vsel %vm1939, %v1735, %v2003
    %v2068 = vsel %vm1940, %v1740, %v2004
    %v2069 = vsel %vm1941, %v1743, %v2005
    %v2070 = vsel %vm1942, %v1748, %v2006
    %v2071 = vsel %vm1943, %v1751, %v2007
    %v2072 = vsel %vm1944, %v1756, %v2008
    %v2073 = vsel %vm1945, %v1759, %v2009
    %v2074 = vsel %vm1946, %v1764, %v2010
    %v2075 = vsel %vm1947, %v1767, %v2011
    %v2076 = vsel %vm1948, %v1772, %v2012
    %v2077 = vsel %vm1949, %v1775, %v2013
    %v2078 = vsel %vm1950, %v1780, %v2014
    %v2079 = vsel %vm1951, %v1783, %v2015
    %v2080 = vsel %vm1952, %v1788, %v2016
    %v2081 = vsel %vm1953, %v1791, %v2017
    %v2082 = vsel %vm1954, %v1796, %v2018
    %v2083 = vsel %vm1955, %v1799, %v2019
    %v2084 = vsel %vm1956, %v1804, %v2020
    %v2085 = vsel %vm1957, %v1807, %v2021
    %v2086 = vsel %vm1958, %v1812, %v2022
    %v2087 = vsel %vm1959, %v1815, %v2023
    %v2088 = vsel %vm1960, %v1820, %v2024
    %v2089 = vsel %vm1961, %v1823, %v2025
    %v2090 = vsel %vm1962, %v1828, %v2026
    %v2091 = vsel %vm1963, %v1831, %v2027
    %v2092 = vsel %vm1964, %v1836, %v2028
    %v2093 = vsel %vm1965, %v1839, %v2029
    %v2094 = vsel %vm1966, %v1844, %v2030
    %v2095 = vsel %vm1967, %v1847, %v2031
    %v2096 = vsel %vm1968, %v1852, %v2032
    %v2097 = vsel %vm1969, %v1855, %v2033
    %v2098 = vsel %vm1970, %v1860, %v2034
    %v2099 = vsel %vm1971, %v1863, %v2035
    %v2100 = vsel %vm1972, %v1868, %v2036
    %v2101 = vsel %vm1973, %v1871, %v2037
    %v2102 = vsel %vm1974, %v1876, %v2038
    %v2103 = vsel %vm1975, %v1879, %v2039
    %v2104 = vsel %vm1976, %v1884, %v2040
    %v2105 = vsel %vm1977, %v1887, %v2041
    %v2106 = vsel %vm1978, %v1892, %v2042
    %v2107 = vsel %vm1979, %v1895, %v2043
    %v2108 = vsel %vm1980, %v1900, %v2044
    %v2109 = vsel %vm1981, %v1903, %v2045
    %v2110 = vsel %vm1982, %v1908, %v2046
    %v2111 = vsel %vm1983, %v1911, %v2047
    %v2112 = vsel %vm1984, %v1916, %v2048
    %v2113 = vsel %vm1985, %v1919, %v2049
    %v2114 = vpack.c.bf16 %v2051, %v2050
    %v2115 = vpack.c.bf16 %v2053, %v2052
    %v2116 = vpack.c.bf16 %v2055, %v2054
    %v2117 = vpack.c.bf16 %v2057, %v2056
    %v2118 = vpack.c.bf16 %v2059, %v2058
    %v2119 = vpack.c.bf16 %v2061, %v2060
    %v2120 = vpack.c.bf16 %v2063, %v2062
    %v2121 = vpack.c.bf16 %v2065, %v2064
    %v2122 = vpack.c.bf16 %v2067, %v2066
    %v2123 = vpack.c.bf16 %v2069, %v2068
    %v2124 = vpack.c.bf16 %v2071, %v2070
    %v2125 = vpack.c.bf16 %v2073, %v2072
    %v2126 = vpack.c.bf16 %v2075, %v2074
    %v2127 = vpack.c.bf16 %v2077, %v2076
    %v2128 = vpack.c.bf16 %v2079, %v2078
    %v2129 = vpack.c.bf16 %v2081, %v2080
    %v2130 = vpack.c.bf16 %v2083, %v2082
    %v2131 = vpack.c.bf16 %v2085, %v2084
    %v2132 = vpack.c.bf16 %v2087, %v2086
    %v2133 = vpack.c.bf16 %v2089, %v2088
    %v2134 = vpack.c.bf16 %v2091, %v2090
    %v2135 = vpack.c.bf16 %v2093, %v2092
    %v2136 = vpack.c.bf16 %v2095, %v2094
    %v2137 = vpack.c.bf16 %v2097, %v2096
    %v2138 = vpack.c.bf16 %v2099, %v2098
    %v2139 = vpack.c.bf16 %v2101, %v2100
    %v2140 = vpack.c.bf16 %v2103, %v2102
    %v2141 = vpack.c.bf16 %v2105, %v2104
    %v2142 = vpack.c.bf16 %v2107, %v2106
    %v2143 = vpack.c.bf16 %v2109, %v2108
    %v2144 = vpack.c.bf16 %v2111, %v2110
    %v2145 = vpack.c.bf16 %v2113, %v2112
    %v2146 = vld [vmem:[%s7] sm:$0xf]
    %v2147 = vld [vmem:[%s7 + $0x4] sm:$0xf]
    %v2148 = vld [vmem:[%s7 + $0x8] sm:$0xf]
    %v2149 = vld [vmem:[%s7 + $0xc] sm:$0xf]
    %v2150 = vld [vmem:[%s8] sm:$0x1]
    %v2152 = vlaneseq
    %v2153 = vshrl.u32 %v2152, 7
    %v2154 = vsub.s32 0, %v2153
    %v2155 = vrot.slane %v2150, %v2154
    %v2161 = vunpack.c.l.b16 %v2146
    %v2162 = vunpack.c.l.b16 %v2147
    %v2163 = vunpack.c.l.b16 %v2148
    %v2164 = vunpack.c.l.b16 %v2149
    %v2165 = vpack.c.b16 %v2162, %v2161
    %v2166 = vpack.c.b16 %v2164, %v2163
    %vm2169 = vcmask 261120
    %v2171 = vsel %vm2169, %v2114, 0
    %v2174 = vsel %vm2169, %v2115, 0
    %v2177 = vsel %vm2169, %v2116, 0
    %v2180 = vsel %vm2169, %v2117, 0
    %v2183 = vsel %vm2169, %v2118, 0
    %v2186 = vsel %vm2169, %v2119, 0
    %v2189 = vsel %vm2169, %v2120, 0
    %v2192 = vsel %vm2169, %v2121, 0
    %v2195 = vsel %vm2169, %v2122, 0
    %v2198 = vsel %vm2169, %v2123, 0
    %v2201 = vsel %vm2169, %v2124, 0
    %v2204 = vsel %vm2169, %v2125, 0
    %v2207 = vsel %vm2169, %v2126, 0
    %v2210 = vsel %vm2169, %v2127, 0
    %v2213 = vsel %vm2169, %v2128, 0
    %v2216 = vsel %vm2169, %v2129, 0
    %v2219 = vsel %vm2169, %v2130, 0
    %v2222 = vsel %vm2169, %v2131, 0
    %v2225 = vsel %vm2169, %v2132, 0
    %v2228 = vsel %vm2169, %v2133, 0
    %v2231 = vsel %vm2169, %v2134, 0
    %v2234 = vsel %vm2169, %v2135, 0
    %v2237 = vsel %vm2169, %v2136, 0
    %v2240 = vsel %vm2169, %v2137, 0
    %v2243 = vsel %vm2169, %v2138, 0
    %v2246 = vsel %vm2169, %v2139, 0
    %v2249 = vsel %vm2169, %v2140, 0
    %v2252 = vsel %vm2169, %v2141, 0
    %v2255 = vsel %vm2169, %v2142, 0
    %v2258 = vsel %vm2169, %v2143, 0
    %v2261 = vsel %vm2169, %v2144, 0
    %v2264 = vsel %vm2169, %v2145, 0
    %2266 = vmatprep.subr.bf16.mxu0 0
    %2267 = vmatpush1.bf16.msra.mxu0 0
    %2268 = vmatprep.subr.bf16.mxu0 0
    %2269 = vmatpush1.bf16.msra.mxu0 0
    %2270 = vmatprep.subr.bf16.mxu0 0
    %2271 = vmatpush1.bf16.msra.mxu0 0
    %2272 = vmatprep.subr.bf16.mxu0 0
    %2273 = vmatpush1.bf16.msra.mxu0 0
    %2274 = vmatprep.subr.bf16.mxu0 0
    %2275 = vmatpush1.bf16.msra.mxu0 0
    %2276 = vmatprep.subr.bf16.mxu0 0
    %2277 = vmatpush1.bf16.msra.mxu0 0
    %2278 = vmatprep.subr.bf16.mxu0 0
    %2279 = vmatpush1.bf16.msra.mxu0 %v2166
    %2280 = vmatprep.subr.bf16.mxu0 0
    %2281 = vmatpush1.bf16.msra.mxu0 %v2165
    %2282 = vmatprep.subr.bf16.mxu0 0
    %2283 = vmatpush2.bf16.msra.mxu0 0
    %2284 = vmatprep.subr.bf16.mxu0 0
    %2285 = vmatpush2.bf16.msra.mxu0 0
    %2286 = vmatprep.subr.bf16.mxu0 0
    %2287 = vmatpush2.bf16.msra.mxu0 0
    %2288 = vmatprep.subr.bf16.mxu0 0
    %2289 = vmatpush2.bf16.msra.mxu0 0
    %2290 = vmatprep.subr.bf16.mxu0 0
    %2291 = vmatpush2.bf16.msra.mxu0 0
    %2292 = vmatprep.subr.bf16.mxu0 0
    %2293 = vmatpush2.bf16.msra.mxu0 0
    %2294 = vmatprep.subr.bf16.mxu0 0
    %2295 = vmatpush2.bf16.msra.mxu0 0
    %2296 = vmatprep.subr.bf16.mxu0 0
    %2297 = vmatpush2.bf16.msra.mxu0 0
    %2298 = vmatprep.mubr.bf16.mxu0 0
    %2299 = vmatmul.mubr.bf16.gmra.mxu0 %v2171
    %v2300 = vpop.f32.mrf.mxu0
    %v2301 = vadd.f32 %v2155, %v2300
    %v2302 = vpop.f32.mrf.mxu0
    %v2303 = vpop.f32.mrf.mxu0
    %v2304 = vadd.f32 %v2155, %v2303
    %v2305 = vpop.f32.mrf.mxu0
    %2306 = vmatprep.mubr.bf16.mxu0 0
    %2307 = vmatmul.mubr.bf16.gmra.mxu0 %v2174
    %v2308 = vpop.f32.mrf.mxu0
    %v2309 = vadd.f32 %v2155, %v2308
    %v2310 = vpop.f32.mrf.mxu0
    %v2311 = vpop.f32.mrf.mxu0
    %v2312 = vadd.f32 %v2155, %v2311
    %v2313 = vpop.f32.mrf.mxu0
    %2314 = vmatprep.mubr.bf16.mxu0 0
    %2315 = vmatmul.mubr.bf16.gmra.mxu0 %v2177
    %v2316 = vpop.f32.mrf.mxu0
    %v2317 = vadd.f32 %v2155, %v2316
    %v2318 = vpop.f32.mrf.mxu0
    %v2319 = vpop.f32.mrf.mxu0
    %v2320 = vadd.f32 %v2155, %v2319
    %v2321 = vpop.f32.mrf.mxu0
    %2322 = vmatprep.mubr.bf16.mxu0 0
    %2323 = vmatmul.mubr.bf16.gmra.mxu0 %v2180
    %v2324 = vpop.f32.mrf.mxu0
    %v2325 = vadd.f32 %v2155, %v2324
    %v2326 = vpop.f32.mrf.mxu0
    %v2327 = vpop.f32.mrf.mxu0
    %v2328 = vadd.f32 %v2155, %v2327
    %v2329 = vpop.f32.mrf.mxu0
    %2330 = vmatprep.mubr.bf16.mxu0 0
    %2331 = vmatmul.mubr.bf16.gmra.mxu0 %v2183
    %v2332 = vpop.f32.mrf.mxu0
    %v2333 = vadd.f32 %v2155, %v2332
    %v2334 = vpop.f32.mrf.mxu0
    %v2335 = vpop.f32.mrf.mxu0
    %v2336 = vadd.f32 %v2155, %v2335
    %v2337 = vpop.f32.mrf.mxu0
    %2338 = vmatprep.mubr.bf16.mxu0 0
    %2339 = vmatmul.mubr.bf16.gmra.mxu0 %v2186
    %v2340 = vpop.f32.mrf.mxu0
    %v2341 = vadd.f32 %v2155, %v2340
    %v2342 = vpop.f32.mrf.mxu0
    %v2343 = vpop.f32.mrf.mxu0
    %v2344 = vadd.f32 %v2155, %v2343
    %v2345 = vpop.f32.mrf.mxu0
    %2346 = vmatprep.mubr.bf16.mxu0 0
    %2347 = vmatmul.mubr.bf16.gmra.mxu0 %v2189
    %v2348 = vpop.f32.mrf.mxu0
    %v2349 = vadd.f32 %v2155, %v2348
    %v2350 = vpop.f32.mrf.mxu0
    %v2351 = vpop.f32.mrf.mxu0
    %v2352 = vadd.f32 %v2155, %v2351
    %v2353 = vpop.f32.mrf.mxu0
    %2354 = vmatprep.mubr.bf16.mxu0 0
    %2355 = vmatmul.mubr.bf16.gmra.mxu0 %v2192
    %v2356 = vpop.f32.mrf.mxu0
    %v2357 = vadd.f32 %v2155, %v2356
    %v2358 = vpop.f32.mrf.mxu0
    %v2359 = vpop.f32.mrf.mxu0
    %v2360 = vadd.f32 %v2155, %v2359
    %v2361 = vpop.f32.mrf.mxu0
    %2362 = vmatprep.mubr.bf16.mxu0 0
    %2363 = vmatmul.mubr.bf16.gmra.mxu0 %v2195
    %v2364 = vpop.f32.mrf.mxu0
    %v2365 = vadd.f32 %v2155, %v2364
    %v2366 = vpop.f32.mrf.mxu0
    %v2367 = vpop.f32.mrf.mxu0
    %v2368 = vadd.f32 %v2155, %v2367
    %v2369 = vpop.f32.mrf.mxu0
    %2370 = vmatprep.mubr.bf16.mxu0 0
    %2371 = vmatmul.mubr.bf16.gmra.mxu0 %v2198
    %v2372 = vpop.f32.mrf.mxu0
    %v2373 = vadd.f32 %v2155, %v2372
    %v2374 = vpop.f32.mrf.mxu0
    %v2375 = vpop.f32.mrf.mxu0
    %v2376 = vadd.f32 %v2155, %v2375
    %v2377 = vpop.f32.mrf.mxu0
    %2378 = vmatprep.mubr.bf16.mxu0 0
    %2379 = vmatmul.mubr.bf16.gmra.mxu0 %v2201
    %v2380 = vpop.f32.mrf.mxu0
    %v2381 = vadd.f32 %v2155, %v2380
    %v2382 = vpop.f32.mrf.mxu0
    %v2383 = vpop.f32.mrf.mxu0
    %v2384 = vadd.f32 %v2155, %v2383
    %v2385 = vpop.f32.mrf.mxu0
    %2386 = vmatprep.mubr.bf16.mxu0 0
    %2387 = vmatmul.mubr.bf16.gmra.mxu0 %v2204
    %v2388 = vpop.f32.mrf.mxu0
    %v2389 = vadd.f32 %v2155, %v2388
    %v2390 = vpop.f32.mrf.mxu0
    %v2391 = vpop.f32.mrf.mxu0
    %v2392 = vadd.f32 %v2155, %v2391
    %v2393 = vpop.f32.mrf.mxu0
    %2394 = vmatprep.mubr.bf16.mxu0 0
    %2395 = vmatmul.mubr.bf16.gmra.mxu0 %v2207
    %v2396 = vpop.f32.mrf.mxu0
    %v2397 = vadd.f32 %v2155, %v2396
    %v2398 = vpop.f32.mrf.mxu0
    %v2399 = vpop.f32.mrf.mxu0
    %v2400 = vadd.f32 %v2155, %v2399
    %v2401 = vpop.f32.mrf.mxu0
    %2402 = vmatprep.mubr.bf16.mxu0 0
    %2403 = vmatmul.mubr.bf16.gmra.mxu0 %v2210
    %v2404 = vpop.f32.mrf.mxu0
    %v2405 = vadd.f32 %v2155, %v2404
    %v2406 = vpop.f32.mrf.mxu0
    %v2407 = vpop.f32.mrf.mxu0
    %v2408 = vadd.f32 %v2155, %v2407
    %v2409 = vpop.f32.mrf.mxu0
    %2410 = vmatprep.mubr.bf16.mxu0 0
    %2411 = vmatmul.mubr.bf16.gmra.mxu0 %v2213
    %v2412 = vpop.f32.mrf.mxu0
    %v2413 = vadd.f32 %v2155, %v2412
    %v2414 = vpop.f32.mrf.mxu0
    %v2415 = vpop.f32.mrf.mxu0
    %v2416 = vadd.f32 %v2155, %v2415
    %v2417 = vpop.f32.mrf.mxu0
    %2418 = vmatprep.mubr.bf16.mxu0 0
    %2419 = vmatmul.mubr.bf16.gmra.mxu0 %v2216
    %v2420 = vpop.f32.mrf.mxu0
    %v2421 = vadd.f32 %v2155, %v2420
    %v2422 = vpop.f32.mrf.mxu0
    %v2423 = vpop.f32.mrf.mxu0
    %v2424 = vadd.f32 %v2155, %v2423
    %v2425 = vpop.f32.mrf.mxu0
    %2426 = vmatprep.mubr.bf16.mxu0 0
    %2427 = vmatmul.mubr.bf16.gmra.mxu0 %v2219
    %v2428 = vpop.f32.mrf.mxu0
    %v2429 = vadd.f32 %v2155, %v2428
    %v2430 = vpop.f32.mrf.mxu0
    %v2431 = vpop.f32.mrf.mxu0
    %v2432 = vadd.f32 %v2155, %v2431
    %v2433 = vpop.f32.mrf.mxu0
    %2434 = vmatprep.mubr.bf16.mxu0 0
    %2435 = vmatmul.mubr.bf16.gmra.mxu0 %v2222
    %v2436 = vpop.f32.mrf.mxu0
    %v2437 = vadd.f32 %v2155, %v2436
    %v2438 = vpop.f32.mrf.mxu0
    %v2439 = vpop.f32.mrf.mxu0
    %v2440 = vadd.f32 %v2155, %v2439
    %v2441 = vpop.f32.mrf.mxu0
    %2442 = vmatprep.mubr.bf16.mxu0 0
    %2443 = vmatmul.mubr.bf16.gmra.mxu0 %v2225
    %v2444 = vpop.f32.mrf.mxu0
    %v2445 = vadd.f32 %v2155, %v2444
    %v2446 = vpop.f32.mrf.mxu0
    %v2447 = vpop.f32.mrf.mxu0
    %v2448 = vadd.f32 %v2155, %v2447
    %v2449 = vpop.f32.mrf.mxu0
    %2450 = vmatprep.mubr.bf16.mxu0 0
    %2451 = vmatmul.mubr.bf16.gmra.mxu0 %v2228
    %v2452 = vpop.f32.mrf.mxu0
    %v2453 = vadd.f32 %v2155, %v2452
    %v2454 = vpop.f32.mrf.mxu0
    %v2455 = vpop.f32.mrf.mxu0
    %v2456 = vadd.f32 %v2155, %v2455
    %v2457 = vpop.f32.mrf.mxu0
    %2458 = vmatprep.mubr.bf16.mxu0 0
    %2459 = vmatmul.mubr.bf16.gmra.mxu0 %v2231
    %v2460 = vpop.f32.mrf.mxu0
    %v2461 = vadd.f32 %v2155, %v2460
    %v2462 = vpop.f32.mrf.mxu0
    %v2463 = vpop.f32.mrf.mxu0
    %v2464 = vadd.f32 %v2155, %v2463
    %v2465 = vpop.f32.mrf.mxu0
    %2466 = vmatprep.mubr.bf16.mxu0 0
    %2467 = vmatmul.mubr.bf16.gmra.mxu0 %v2234
    %v2468 = vpop.f32.mrf.mxu0
    %v2469 = vadd.f32 %v2155, %v2468
    %v2470 = vpop.f32.mrf.mxu0
    %v2471 = vpop.f32.mrf.mxu0
    %v2472 = vadd.f32 %v2155, %v2471
    %v2473 = vpop.f32.mrf.mxu0
    %2474 = vmatprep.mubr.bf16.mxu0 0
    %2475 = vmatmul.mubr.bf16.gmra.mxu0 %v2237
    %v2476 = vpop.f32.mrf.mxu0
    %v2477 = vadd.f32 %v2155, %v2476
    %v2478 = vpop.f32.mrf.mxu0
    %v2479 = vpop.f32.mrf.mxu0
    %v2480 = vadd.f32 %v2155, %v2479
    %v2481 = vpop.f32.mrf.mxu0
    %2482 = vmatprep.mubr.bf16.mxu0 0
    %2483 = vmatmul.mubr.bf16.gmra.mxu0 %v2240
    %v2484 = vpop.f32.mrf.mxu0
    %v2485 = vadd.f32 %v2155, %v2484
    %v2486 = vpop.f32.mrf.mxu0
    %v2487 = vpop.f32.mrf.mxu0
    %v2488 = vadd.f32 %v2155, %v2487
    %v2489 = vpop.f32.mrf.mxu0
    %2490 = vmatprep.mubr.bf16.mxu0 0
    %2491 = vmatmul.mubr.bf16.gmra.mxu0 %v2243
    %v2492 = vpop.f32.mrf.mxu0
    %v2493 = vadd.f32 %v2155, %v2492
    %v2494 = vpop.f32.mrf.mxu0
    %v2495 = vpop.f32.mrf.mxu0
    %v2496 = vadd.f32 %v2155, %v2495
    %v2497 = vpop.f32.mrf.mxu0
    %2498 = vmatprep.mubr.bf16.mxu0 0
    %2499 = vmatmul.mubr.bf16.gmra.mxu0 %v2246
    %v2500 = vpop.f32.mrf.mxu0
    %v2501 = vadd.f32 %v2155, %v2500
    %v2502 = vpop.f32.mrf.mxu0
    %v2503 = vpop.f32.mrf.mxu0
    %v2504 = vadd.f32 %v2155, %v2503
    %v2505 = vpop.f32.mrf.mxu0
    %2506 = vmatprep.mubr.bf16.mxu0 0
    %2507 = vmatmul.mubr.bf16.gmra.mxu0 %v2249
    %v2508 = vpop.f32.mrf.mxu0
    %v2509 = vadd.f32 %v2155, %v2508
    %v2510 = vpop.f32.mrf.mxu0
    %v2511 = vpop.f32.mrf.mxu0
    %v2512 = vadd.f32 %v2155, %v2511
    %v2513 = vpop.f32.mrf.mxu0
    %2514 = vmatprep.mubr.bf16.mxu0 0
    %2515 = vmatmul.mubr.bf16.gmra.mxu0 %v2252
    %v2516 = vpop.f32.mrf.mxu0
    %v2517 = vadd.f32 %v2155, %v2516
    %v2518 = vpop.f32.mrf.mxu0
    %v2519 = vpop.f32.mrf.mxu0
    %v2520 = vadd.f32 %v2155, %v2519
    %v2521 = vpop.f32.mrf.mxu0
    %2522 = vmatprep.mubr.bf16.mxu0 0
    %2523 = vmatmul.mubr.bf16.gmra.mxu0 %v2255
    %v2524 = vpop.f32.mrf.mxu0
    %v2525 = vadd.f32 %v2155, %v2524
    %v2526 = vpop.f32.mrf.mxu0
    %v2527 = vpop.f32.mrf.mxu0
    %v2528 = vadd.f32 %v2155, %v2527
    %v2529 = vpop.f32.mrf.mxu0
    %2530 = vmatprep.mubr.bf16.mxu0 0
    %2531 = vmatmul.mubr.bf16.gmra.mxu0 %v2258
    %v2532 = vpop.f32.mrf.mxu0
    %v2533 = vadd.f32 %v2155, %v2532
    %v2534 = vpop.f32.mrf.mxu0
    %v2535 = vpop.f32.mrf.mxu0
    %v2536 = vadd.f32 %v2155, %v2535
    %v2537 = vpop.f32.mrf.mxu0
    %2538 = vmatprep.mubr.bf16.mxu0 0
    %2539 = vmatmul.mubr.bf16.gmra.mxu0 %v2261
    %v2540 = vpop.f32.mrf.mxu0
    %v2541 = vadd.f32 %v2155, %v2540
    %v2542 = vpop.f32.mrf.mxu0
    %v2543 = vpop.f32.mrf.mxu0
    %v2544 = vadd.f32 %v2155, %v2543
    %v2545 = vpop.f32.mrf.mxu0
    %2546 = vmatprep.mubr.bf16.mxu0 0
    %2547 = vmatmul.mubr.bf16.gmra.mxu0 %v2264
    %v2548 = vpop.f32.mrf.mxu0
    %v2549 = vadd.f32 %v2155, %v2548
    %v2550 = vpop.f32.mrf.mxu0
    %v2551 = vpop.f32.mrf.mxu0
    %v2552 = vadd.f32 %v2155, %v2551
    %v2553 = vpop.f32.mrf.mxu0
    %2554 = vdwg.mxu0
    %vm2555 = vcmask 130048
    %2556 = vst.msk [vmem:[#allocation2] sm:$0xff] %vm2555, %v2301
    %2557 = vst.msk [vmem:[#allocation2 + $0x8] sm:$0xff] %vm2555, %v2304
    %2558 = vst.msk [vmem:[#allocation2 + $0x10] sm:$0xff] %vm2555, %v2309
    %2559 = vst.msk [vmem:[#allocation2 + $0x18] sm:$0xff] %vm2555, %v2312
    %2560 = vst.msk [vmem:[#allocation2 + $0x20] sm:$0xff] %vm2555, %v2317
    %2561 = vst.msk [vmem:[#allocation2 + $0x28] sm:$0xff] %vm2555, %v2320
    %2562 = vst.msk [vmem:[#allocation2 + $0x30] sm:$0xff] %vm2555, %v2325
    %2563 = vst.msk [vmem:[#allocation2 + $0x38] sm:$0xff] %vm2555, %v2328
    %2564 = vst.msk [vmem:[#allocation2 + $0x40] sm:$0xff] %vm2555, %v2333
    %2565 = vst.msk [vmem:[#allocation2 + $0x48] sm:$0xff] %vm2555, %v2336
    %2566 = vst.msk [vmem:[#allocation2 + $0x50] sm:$0xff] %vm2555, %v2341
    %2567 = vst.msk [vmem:[#allocation2 + $0x58] sm:$0xff] %vm2555, %v2344
    %2568 = vst.msk [vmem:[#allocation2 + $0x60] sm:$0xff] %vm2555, %v2349
    %2569 = vst.msk [vmem:[#allocation2 + $0x68] sm:$0xff] %vm2555, %v2352
    %2570 = vst.msk [vmem:[#allocation2 + $0x70] sm:$0xff] %vm2555, %v2357
    %2571 = vst.msk [vmem:[#allocation2 + $0x78] sm:$0xff] %vm2555, %v2360
    %2572 = vst.msk [vmem:[#allocation2 + $0x80] sm:$0xff] %vm2555, %v2365
    %2573 = vst.msk [vmem:[#allocation2 + $0x88] sm:$0xff] %vm2555, %v2368
    %2574 = vst.msk [vmem:[#allocation2 + $0x90] sm:$0xff] %vm2555, %v2373
    %2575 = vst.msk [vmem:[#allocation2 + $0x98] sm:$0xff] %vm2555, %v2376
    %2576 = vst.msk [vmem:[#allocation2 + $0xa0] sm:$0xff] %vm2555, %v2381
    %2577 = vst.msk [vmem:[#allocation2 + $0xa8] sm:$0xff] %vm2555, %v2384
    %2578 = vst.msk [vmem:[#allocation2 + $0xb0] sm:$0xff] %vm2555, %v2389
    %2579 = vst.msk [vmem:[#allocation2 + $0xb8] sm:$0xff] %vm2555, %v2392
    %2580 = vst.msk [vmem:[#allocation2 + $0xc0] sm:$0xff] %vm2555, %v2397
    %2581 = vst.msk [vmem:[#allocation2 + $0xc8] sm:$0xff] %vm2555, %v2400
    %2582 = vst.msk [vmem:[#allocation2 + $0xd0] sm:$0xff] %vm2555, %v2405
    %2583 = vst.msk [vmem:[#allocation2 + $0xd8] sm:$0xff] %vm2555, %v2408
    %2584 = vst.msk [vmem:[#allocation2 + $0xe0] sm:$0xff] %vm2555, %v2413
    %2585 = vst.msk [vmem:[#allocation2 + $0xe8] sm:$0xff] %vm2555, %v2416
    %2586 = vst.msk [vmem:[#allocation2 + $0xf0] sm:$0xff] %vm2555, %v2421
    %2587 = vst.msk [vmem:[#allocation2 + $0xf8] sm:$0xff] %vm2555, %v2424
    %2588 = vst.msk [vmem:[#allocation2 + $0x100] sm:$0xff] %vm2555, %v2429
    %2589 = vst.msk [vmem:[#allocation2 + $0x108] sm:$0xff] %vm2555, %v2432
    %2590 = vst.msk [vmem:[#allocation2 + $0x110] sm:$0xff] %vm2555, %v2437
    %2591 = vst.msk [vmem:[#allocation2 + $0x118] sm:$0xff] %vm2555, %v2440
    %2592 = vst.msk [vmem:[#allocation2 + $0x120] sm:$0xff] %vm2555, %v2445
    %2593 = vst.msk [vmem:[#allocation2 + $0x128] sm:$0xff] %vm2555, %v2448
    %2594 = vst.msk [vmem:[#allocation2 + $0x130] sm:$0xff] %vm2555, %v2453
    %2595 = vst.msk [vmem:[#allocation2 + $0x138] sm:$0xff] %vm2555, %v2456
    %2596 = vst.msk [vmem:[#allocation2 + $0x140] sm:$0xff] %vm2555, %v2461
    %2597 = vst.msk [vmem:[#allocation2 + $0x148] sm:$0xff] %vm2555, %v2464
    %2598 = vst.msk [vmem:[#allocation2 + $0x150] sm:$0xff] %vm2555, %v2469
    %2599 = vst.msk [vmem:[#allocation2 + $0x158] sm:$0xff] %vm2555, %v2472
    %2600 = vst.msk [vmem:[#allocation2 + $0x160] sm:$0xff] %vm2555, %v2477
    %2601 = vst.msk [vmem:[#allocation2 + $0x168] sm:$0xff] %vm2555, %v2480
    %2602 = vst.msk [vmem:[#allocation2 + $0x170] sm:$0xff] %vm2555, %v2485
    %2603 = vst.msk [vmem:[#allocation2 + $0x178] sm:$0xff] %vm2555, %v2488
    %2604 = vst.msk [vmem:[#allocation2 + $0x180] sm:$0xff] %vm2555, %v2493
    %2605 = vst.msk [vmem:[#allocation2 + $0x188] sm:$0xff] %vm2555, %v2496
    %2606 = vst.msk [vmem:[#allocation2 + $0x190] sm:$0xff] %vm2555, %v2501
    %2607 = vst.msk [vmem:[#allocation2 + $0x198] sm:$0xff] %vm2555, %v2504
    %2608 = vst.msk [vmem:[#allocation2 + $0x1a0] sm:$0xff] %vm2555, %v2509
    %2609 = vst.msk [vmem:[#allocation2 + $0x1a8] sm:$0xff] %vm2555, %v2512
    %2610 = vst.msk [vmem:[#allocation2 + $0x1b0] sm:$0xff] %vm2555, %v2517
    %2611 = vst.msk [vmem:[#allocation2 + $0x1b8] sm:$0xff] %vm2555, %v2520
    %2612 = vst.msk [vmem:[#allocation2 + $0x1c0] sm:$0xff] %vm2555, %v2525
    %2613 = vst.msk [vmem:[#allocation2 + $0x1c8] sm:$0xff] %vm2555, %v2528
    %2614 = vst.msk [vmem:[#allocation2 + $0x1d0] sm:$0xff] %vm2555, %v2533
    %2615 = vst.msk [vmem:[#allocation2 + $0x1d8] sm:$0xff] %vm2555, %v2536
    %2616 = vst.msk [vmem:[#allocation2 + $0x1e0] sm:$0xff] %vm2555, %v2541
    %2617 = vst.msk [vmem:[#allocation2 + $0x1e8] sm:$0xff] %vm2555, %v2544
    %2618 = vst.msk [vmem:[#allocation2 + $0x1f0] sm:$0xff] %vm2555, %v2549
    %2619 = vst.msk [vmem:[#allocation2 + $0x1f8] sm:$0xff] %vm2555, %v2552
    // Predicated region
    $region38: #{tpu_custom_call.1} parent=1 // pred_check
      _
    $region39: #{tpu_custom_call.1} parent=1 // pred_check_branch
      %2621 = sbr.rel (0) target = $region41
    $region40: #{tpu_custom_call.1} parent=1 // pred_region
      // Predicated region
      $region42: #{tpu_custom_call.1} parent=40 // pred_check
        _
      $region43: #{tpu_custom_call.1} parent=40 // pred_check_branch
        %2623 = sbr.rel (0) target = $region45
      $region44: #{tpu_custom_call.1} parent=40 // pred_region
        // Predicated region
        $region46: #{tpu_custom_call.1} parent=44 // pred_check
          _
        $region47: #{tpu_custom_call.1} parent=44 // pred_check_branch
          %2625 = sbr.rel (0) target = $region49
        $region48: #{tpu_custom_call.1} parent=44 // pred_region
          // Predicated region
          $region61: #{tpu_custom_call.1} parent=48 // pred_check
            _
          $region62: #{tpu_custom_call.1} parent=48 // pred_check_branch
            %2715 = sbr.rel (0) target = $region64
          $region63: #{tpu_custom_call.1} parent=48 // pred_region
            loop: start=0, step=1, limit=1
            $region65: #{tpu_custom_call.1} parent=63 // loop_pre_header
              _
            $region66: #{tpu_custom_call.1} parent=63 // loop_header
              %s2717 = sphi 0, %s2721
              %p2718 = scmp.ge.s32.totalorder %s2717, 1
              %s2722 = sphi [#allocation2], [#allocation2]
              %s2723 = sphi %s9, %s9
            $region67: #{tpu_custom_call.1} parent=63 // loop_header_branch
              %2720 = sbr.rel (%p2718) target = $region71
            $region68: #{tpu_custom_call.1} parent=63 // loop_body
              %v2724 = vld [vmem:[%s2722] sm:$0xff]
              %2725 = vst [vmem:[%s2723] sm:$0xff] %v2724
              %v2726 = vld [vmem:[%s2722 + $0x8] sm:$0xff]
              %2727 = vst [vmem:[%s2723 + $0x8] sm:$0xff] %v2726
              %v2728 = vld [vmem:[%s2722 + $0x10] sm:$0xff]
              %2729 = vst [vmem:[%s2723 + $0x10] sm:$0xff] %v2728
              %v2730 = vld [vmem:[%s2722 + $0x18] sm:$0xff]
              %2731 = vst [vmem:[%s2723 + $0x18] sm:$0xff] %v2730
              %v2732 = vld [vmem:[%s2722 + $0x20] sm:$0xff]
              %2733 = vst [vmem:[%s2723 + $0x20] sm:$0xff] %v2732
              %v2734 = vld [vmem:[%s2722 + $0x28] sm:$0xff]
              %2735 = vst [vmem:[%s2723 + $0x28] sm:$0xff] %v2734
              %v2736 = vld [vmem:[%s2722 + $0x30] sm:$0xff]
              %2737 = vst [vmem:[%s2723 + $0x30] sm:$0xff] %v2736
              %v2738 = vld [vmem:[%s2722 + $0x38] sm:$0xff]
              %2739 = vst [vmem:[%s2723 + $0x38] sm:$0xff] %v2738
              %v2740 = vld [vmem:[%s2722 + $0x40] sm:$0xff]
              %2741 = vst [vmem:[%s2723 + $0x40] sm:$0xff] %v2740
              %v2742 = vld [vmem:[%s2722 + $0x48] sm:$0xff]
              %2743 = vst [vmem:[%s2723 + $0x48] sm:$0xff] %v2742
              %v2744 = vld [vmem:[%s2722 + $0x50] sm:$0xff]
              %2745 = vst [vmem:[%s2723 + $0x50] sm:$0xff] %v2744
              %v2746 = vld [vmem:[%s2722 + $0x58] sm:$0xff]
              %2747 = vst [vmem:[%s2723 + $0x58] sm:$0xff] %v2746
              %v2748 = vld [vmem:[%s2722 + $0x60] sm:$0xff]
              %2749 = vst [vmem:[%s2723 + $0x60] sm:$0xff] %v2748
              %v2750 = vld [vmem:[%s2722 + $0x68] sm:$0xff]
              %2751 = vst [vmem:[%s2723 + $0x68] sm:$0xff] %v2750
              %v2752 = vld [vmem:[%s2722 + $0x70] sm:$0xff]
              %2753 = vst [vmem:[%s2723 + $0x70] sm:$0xff] %v2752
              %v2754 = vld [vmem:[%s2722 + $0x78] sm:$0xff]
              %2755 = vst [vmem:[%s2723 + $0x78] sm:$0xff] %v2754
              %v2756 = vld [vmem:[%s2722 + $0x80] sm:$0xff]
              %2757 = vst [vmem:[%s2723 + $0x80] sm:$0xff] %v2756
              %v2758 = vld [vmem:[%s2722 + $0x88] sm:$0xff]
              %2759 = vst [vmem:[%s2723 + $0x88] sm:$0xff] %v2758
              %v2760 = vld [vmem:[%s2722 + $0x90] sm:$0xff]
              %2761 = vst [vmem:[%s2723 + $0x90] sm:$0xff] %v2760
              %v2762 = vld [vmem:[%s2722 + $0x98] sm:$0xff]
              %2763 = vst [vmem:[%s2723 + $0x98] sm:$0xff] %v2762
              %v2764 = vld [vmem:[%s2722 + $0xa0] sm:$0xff]
              %2765 = vst [vmem:[%s2723 + $0xa0] sm:$0xff] %v2764
              %v2766 = vld [vmem:[%s2722 + $0xa8] sm:$0xff]
              %2767 = vst [vmem:[%s2723 + $0xa8] sm:$0xff] %v2766
              %v2768 = vld [vmem:[%s2722 + $0xb0] sm:$0xff]
              %2769 = vst [vmem:[%s2723 + $0xb0] sm:$0xff] %v2768
              %v2770 = vld [vmem:[%s2722 + $0xb8] sm:$0xff]
              %2771 = vst [vmem:[%s2723 + $0xb8] sm:$0xff] %v2770
              %v2772 = vld [vmem:[%s2722 + $0xc0] sm:$0xff]
              %2773 = vst [vmem:[%s2723 + $0xc0] sm:$0xff] %v2772
              %v2774 = vld [vmem:[%s2722 + $0xc8] sm:$0xff]
              %2775 = vst [vmem:[%s2723 + $0xc8] sm:$0xff] %v2774
              %v2776 = vld [vmem:[%s2722 + $0xd0] sm:$0xff]
              %2777 = vst [vmem:[%s2723 + $0xd0] sm:$0xff] %v2776
              %v2778 = vld [vmem:[%s2722 + $0xd8] sm:$0xff]
              %2779 = vst [vmem:[%s2723 + $0xd8] sm:$0xff] %v2778
              %v2780 = vld [vmem:[%s2722 + $0xe0] sm:$0xff]
              %2781 = vst [vmem:[%s2723 + $0xe0] sm:$0xff] %v2780
              %v2782 = vld [vmem:[%s2722 + $0xe8] sm:$0xff]
              %2783 = vst [vmem:[%s2723 + $0xe8] sm:$0xff] %v2782
              %v2784 = vld [vmem:[%s2722 + $0xf0] sm:$0xff]
              %2785 = vst [vmem:[%s2723 + $0xf0] sm:$0xff] %v2784
              %v2786 = vld [vmem:[%s2722 + $0xf8] sm:$0xff]
              %2787 = vst [vmem:[%s2723 + $0xf8] sm:$0xff] %v2786
              %v2788 = vld [vmem:[%s2722 + $0x100] sm:$0xff]
              %2789 = vst [vmem:[%s2723 + $0x100] sm:$0xff] %v2788
              %v2790 = vld [vmem:[%s2722 + $0x108] sm:$0xff]
              %2791 = vst [vmem:[%s2723 + $0x108] sm:$0xff] %v2790
              %v2792 = vld [vmem:[%s2722 + $0x110] sm:$0xff]
              %2793 = vst [vmem:[%s2723 + $0x110] sm:$0xff] %v2792
              %v2794 = vld [vmem:[%s2722 + $0x118] sm:$0xff]
              %2795 = vst [vmem:[%s2723 + $0x118] sm:$0xff] %v2794
              %v2796 = vld [vmem:[%s2722 + $0x120] sm:$0xff]
              %2797 = vst [vmem:[%s2723 + $0x120] sm:$0xff] %v2796
              %v2798 = vld [vmem:[%s2722 + $0x128] sm:$0xff]
              %2799 = vst [vmem:[%s2723 + $0x128] sm:$0xff] %v2798
            $region69: #{tpu_custom_call.1} parent=63 // loop_footer
              %s2721 = sadd.s32 1, %s2717
            $region70: #{tpu_custom_call.1} parent=63 // loop_footer_branch
              %2716 = sbr.rel target = $region66
            $region71: #{tpu_custom_call.1} parent=63 // loop_exit
              _
          $region64: #{tpu_custom_call.1} parent=48 // pred_fallthru
            _
          // Predicated region
          $region72: #{tpu_custom_call.1} parent=48 // pred_check
            _
          $region73: #{tpu_custom_call.1} parent=48 // pred_check_branch
            %2801 = sbr.rel target = $region75
          $region74: #{tpu_custom_call.1} parent=48 // pred_region
            _
          $region75: #{tpu_custom_call.1} parent=48 // pred_fallthru
            _
        $region49: #{tpu_custom_call.1} parent=44 // pred_fallthru
          _
        // Predicated region
        $region50: #{tpu_custom_call.1} parent=44 // pred_check
          _
        $region51: #{tpu_custom_call.1} parent=44 // pred_check_branch
          %2627 = sbr.rel target = $region53
        $region52: #{tpu_custom_call.1} parent=44 // pred_region
          %s2629 = ssub.s32 256, 1
          loop: start=0, step=1, limit=1
          $region54: #{tpu_custom_call.1} parent=52 // loop_pre_header
            _
          $region55: #{tpu_custom_call.1} parent=52 // loop_header
            %s2631 = sphi 0, %s2635
            %p2632 = scmp.ge.s32.totalorder %s2631, 1
            %s2636 = sphi [#allocation2], [#allocation2]
            %s2637 = sphi %s9, %s9
          $region56: #{tpu_custom_call.1} parent=52 // loop_header_branch
            %2634 = sbr.rel (%p2632) target = $region60
          $region57: #{tpu_custom_call.1} parent=52 // loop_body
            %v2638 = vld [vmem:[%s2636] sm:%s2629]
            %2639 = vst [vmem:[%s2637] sm:%s2629] %v2638
            %v2640 = vld [vmem:[%s2636 + $0x8] sm:%s2629]
            %2641 = vst [vmem:[%s2637 + $0x8] sm:%s2629] %v2640
            %v2642 = vld [vmem:[%s2636 + $0x10] sm:%s2629]
            %2643 = vst [vmem:[%s2637 + $0x10] sm:%s2629] %v2642
            %v2644 = vld [vmem:[%s2636 + $0x18] sm:%s2629]
            %2645 = vst [vmem:[%s2637 + $0x18] sm:%s2629] %v2644
            %v2646 = vld [vmem:[%s2636 + $0x20] sm:%s2629]
            %2647 = vst [vmem:[%s2637 + $0x20] sm:%s2629] %v2646
            %v2648 = vld [vmem:[%s2636 + $0x28] sm:%s2629]
            %2649 = vst [vmem:[%s2637 + $0x28] sm:%s2629] %v2648
            %v2650 = vld [vmem:[%s2636 + $0x30] sm:%s2629]
            %2651 = vst [vmem:[%s2637 + $0x30] sm:%s2629] %v2650
            %v2652 = vld [vmem:[%s2636 + $0x38] sm:%s2629]
            %2653 = vst [vmem:[%s2637 + $0x38] sm:%s2629] %v2652
            %v2654 = vld [vmem:[%s2636 + $0x40] sm:%s2629]
            %2655 = vst [vmem:[%s2637 + $0x40] sm:%s2629] %v2654
            %v2656 = vld [vmem:[%s2636 + $0x48] sm:%s2629]
            %2657 = vst [vmem:[%s2637 + $0x48] sm:%s2629] %v2656
            %v2658 = vld [vmem:[%s2636 + $0x50] sm:%s2629]
            %2659 = vst [vmem:[%s2637 + $0x50] sm:%s2629] %v2658
            %v2660 = vld [vmem:[%s2636 + $0x58] sm:%s2629]
            %2661 = vst [vmem:[%s2637 + $0x58] sm:%s2629] %v2660
            %v2662 = vld [vmem:[%s2636 + $0x60] sm:%s2629]
            %2663 = vst [vmem:[%s2637 + $0x60] sm:%s2629] %v2662
            %v2664 = vld [vmem:[%s2636 + $0x68] sm:%s2629]
            %2665 = vst [vmem:[%s2637 + $0x68] sm:%s2629] %v2664
            %v2666 = vld [vmem:[%s2636 + $0x70] sm:%s2629]
            %2667 = vst [vmem:[%s2637 + $0x70] sm:%s2629] %v2666
            %v2668 = vld [vmem:[%s2636 + $0x78] sm:%s2629]
            %2669 = vst [vmem:[%s2637 + $0x78] sm:%s2629] %v2668
            %v2670 = vld [vmem:[%s2636 + $0x80] sm:%s2629]
            %2671 = vst [vmem:[%s2637 + $0x80] sm:%s2629] %v2670
            %v2672 = vld [vmem:[%s2636 + $0x88] sm:%s2629]
            %2673 = vst [vmem:[%s2637 + $0x88] sm:%s2629] %v2672
            %v2674 = vld [vmem:[%s2636 + $0x90] sm:%s2629]
            %2675 = vst [vmem:[%s2637 + $0x90] sm:%s2629] %v2674
            %v2676 = vld [vmem:[%s2636 + $0x98] sm:%s2629]
            %2677 = vst [vmem:[%s2637 + $0x98] sm:%s2629] %v2676
            %v2678 = vld [vmem:[%s2636 + $0xa0] sm:%s2629]
            %2679 = vst [vmem:[%s2637 + $0xa0] sm:%s2629] %v2678
            %v2680 = vld [vmem:[%s2636 + $0xa8] sm:%s2629]
            %2681 = vst [vmem:[%s2637 + $0xa8] sm:%s2629] %v2680
            %v2682 = vld [vmem:[%s2636 + $0xb0] sm:%s2629]
            %2683 = vst [vmem:[%s2637 + $0xb0] sm:%s2629] %v2682
            %v2684 = vld [vmem:[%s2636 + $0xb8] sm:%s2629]
            %2685 = vst [vmem:[%s2637 + $0xb8] sm:%s2629] %v2684
            %v2686 = vld [vmem:[%s2636 + $0xc0] sm:%s2629]
            %2687 = vst [vmem:[%s2637 + $0xc0] sm:%s2629] %v2686
            %v2688 = vld [vmem:[%s2636 + $0xc8] sm:%s2629]
            %2689 = vst [vmem:[%s2637 + $0xc8] sm:%s2629] %v2688
            %v2690 = vld [vmem:[%s2636 + $0xd0] sm:%s2629]
            %2691 = vst [vmem:[%s2637 + $0xd0] sm:%s2629] %v2690
            %v2692 = vld [vmem:[%s2636 + $0xd8] sm:%s2629]
            %2693 = vst [vmem:[%s2637 + $0xd8] sm:%s2629] %v2692
            %v2694 = vld [vmem:[%s2636 + $0xe0] sm:%s2629]
            %2695 = vst [vmem:[%s2637 + $0xe0] sm:%s2629] %v2694
            %v2696 = vld [vmem:[%s2636 + $0xe8] sm:%s2629]
            %2697 = vst [vmem:[%s2637 + $0xe8] sm:%s2629] %v2696
            %v2698 = vld [vmem:[%s2636 + $0xf0] sm:%s2629]
            %2699 = vst [vmem:[%s2637 + $0xf0] sm:%s2629] %v2698
            %v2700 = vld [vmem:[%s2636 + $0xf8] sm:%s2629]
            %2701 = vst [vmem:[%s2637 + $0xf8] sm:%s2629] %v2700
            %v2702 = vld [vmem:[%s2636 + $0x100] sm:%s2629]
            %2703 = vst [vmem:[%s2637 + $0x100] sm:%s2629] %v2702
            %v2704 = vld [vmem:[%s2636 + $0x108] sm:%s2629]
            %2705 = vst [vmem:[%s2637 + $0x108] sm:%s2629] %v2704
            %v2706 = vld [vmem:[%s2636 + $0x110] sm:%s2629]
            %2707 = vst [vmem:[%s2637 + $0x110] sm:%s2629] %v2706
            %v2708 = vld [vmem:[%s2636 + $0x118] sm:%s2629]
            %2709 = vst [vmem:[%s2637 + $0x118] sm:%s2629] %v2708
            %v2710 = vld [vmem:[%s2636 + $0x120] sm:%s2629]
            %2711 = vst [vmem:[%s2637 + $0x120] sm:%s2629] %v2710
            %v2712 = vld [vmem:[%s2636 + $0x128] sm:%s2629]
            %2713 = vst [vmem:[%s2637 + $0x128] sm:%s2629] %v2712
          $region58: #{tpu_custom_call.1} parent=52 // loop_footer
            %s2635 = sadd.s32 1, %s2631
          $region59: #{tpu_custom_call.1} parent=52 // loop_footer_branch
            %2630 = sbr.rel target = $region55
          $region60: #{tpu_custom_call.1} parent=52 // loop_exit
            _
        $region53: #{tpu_custom_call.1} parent=44 // pred_fallthru
          _
      $region45: #{tpu_custom_call.1} parent=40 // pred_fallthru
        _
      %2802 = vnop
    $region41: #{tpu_custom_call.1} parent=1 // pred_fallthru
      _
    // Predicated region
    $region76: #{tpu_custom_call.1} parent=1 // pred_check
      _
    $region77: #{tpu_custom_call.1} parent=1 // pred_check_branch
      %2804 = sbr.rel (0) target = $region79
    $region78: #{tpu_custom_call.1} parent=1 // pred_region
      _
    $region79: #{tpu_custom_call.1} parent=1 // pred_fallthru
      _

</llo_original>
